<compile_context>
chip_gen: v7x
topology: tpu7x:2x2x1
jax: 0.10.0
libtpu: 0.0.40
codegen_flags: <defaults>
</compile_context>

<pallas_src>
import jax
import jax.numpy as jnp
from jax import lax
from jax.experimental import pallas as pl
from jax.experimental.pallas import tpu as pltpu


# ---------------------------------------------------------------------------
# ConvTranspose2d(k=4, s=2, p=1) tap table.
# For output row 2h+pi the contributions come from input rows h+dh with kernel
# row kh; same table for columns.  Phase order is ph = 2*pi + pj.
_H_TAPS = (((-1, 3), (0, 1)), ((0, 2), (1, 0)))


def _conv_t_taps():
    phases = []
    for pi in range(2):
        for pj in range(2):
            taps = []
            for dh, kh in _H_TAPS[pi]:
                for dw, kw in _H_TAPS[pj]:
                    taps.append((dh, dw, kh, kw))
            phases.append(taps)
    return phases


def _round_up(v, m):
    return ((v + m - 1) // m) * m


def _vmem_limit_bytes():
    """Generation-aware VMEM limit: ~3/4 of physical (96MiB v5e/v6e, 48MiB v7x)."""
    try:
        cap = int(pltpu.get_tpu_info().vmem_capacity_bytes)
    except Exception:
        cap = 0
    if cap <= 0:
        return 64 * 1024 * 1024  # safe on every known generation
    return (cap // 4) * 3


def _pick_h_tile(B, H, W, *, C, Cm, K, vmem_limit=None):
    """Largest divisor of H whose working set fits a generation-aware budget."""
    if vmem_limit is None:
        vmem_limit = _vmem_limit_bytes()
    budget = int(vmem_limit * 0.55)  # headroom for double buffers / scratch

    def ok_align(ht):
        # output block last dim must be a multiple of 128 lanes (or the full dim)
        return ht == H or (ht * W) % 128 == 0

    def bytes_needed(ht):
        he_w = (ht + 2) * W + 2
        ht_w = ht * W
        inp = 2 * K * he_w * 2                    # input window, x2 double-buffer, bf16
        out = 2 * 4 * C * ht_w * 2                # output block, x2 double-buffer, bf16
        wts = 2 * 2 * (Cm * _round_up(K, 128) + 16 * C * _round_up(Cm, 128))
        work = (3 * Cm * he_w * 4                 # h1 / GELU temporaries (f32)
                + 16 * C * he_w * 4               # ConvT matmul result (f32)
                + 8 * C * ht_w * 4)               # phase-assembly temporaries (f32)
        return inp + out + wts + work

    cands = [d for d in range(1, H + 1)
             if H % d == 0 and ok_align(d) and bytes_needed(d) <= budget]
    if not cands:
        cands = [d for d in range(1, H + 1) if H % d == 0 and ok_align(d)]
    ht = cands[-1]
    # Prefer >=2 grid steps (megacore) only when the batch axis cannot supply them.
    if B == 1 and H // ht < 2:
        smaller = [d for d in cands if d < ht]
        if smaller:
            ht = smaller[-1]
    return ht


# ---------------------------------------------------------------------------
# Kernel
def _make_kernel(*, W, Ht, C, Cm, K, taps):
    He = Ht + 2
    HtW = Ht * W
    Wp = He * W + 2  # halo window pixels + one zero guard lane on each side

    def kernel(z_ref, wmask_ref, wf_ref, bf_ref, wct_ref, bnb_ref, out_ref):
        t = pl.program_id(1)
        n_t = pl.num_programs(1)

        ze = z_ref[0, 0]                                   # (K, Wp) bf16

        # fused front linear: reduction 1x1 conv o Haar DWT o feed-forward 1x1
        h1 = jnp.dot(wf_ref[...], ze,
                     preferred_element_type=jnp.float32)   # (Cm, Wp) f32
        h1 = h1 + bf_ref[...]

        # GELU, tanh approximation (EUP tanh; much lighter on the VPU than erf)
        u = 0.7978845608028654 * (h1 + 0.044715 * (h1 * h1 * h1))
        g = 0.5 * h1 * (1.0 + jnp.tanh(u))
        # TODO(synk): nn.Dropout(0.3) is identity at inference; training-mode
        #             dropout is not implemented.

        # zero the guard lanes and the out-of-image halo rows so they contribute
        # nothing to the transposed convolution
        q = lax.broadcasted_iota(jnp.int32, (1, Wp), 1)
        p = q - 1                                          # flattened window pixel
        valid = jnp.logical_and(q >= 1, q <= He * W)
        top_ok = jnp.logical_or(p >= W, t > 0)
        bot_ok = jnp.logical_or(p < (He - 1) * W, t < n_t - 1)
        g = jnp.where(jnp.logical_and(valid, jnp.logical_and(top_ok, bot_ok)),
                      g, 0.0)

        # ConvTranspose2d(Cm, C, 4, stride=2, padding=1) as ONE wide matmul.
        # wct rows are (output-phase, tap, out-channel); BN scale is pre-folded.
        y = jnp.dot(wct_ref[...], g.astype(jnp.bfloat16),
                    preferred_element_type=jnp.float32)    # (16*C, Wp) f32

        keep_m1 = wmask_ref[0:1, :]                        # (1, HtW) {0,1} f32
        keep_p1 = wmask_ref[1:2, :]
        bnb = bnb_ref[...]                                 # (C, 1) f32

        for ph in range(4):
            acc = None
            for ti, (dh, dw, _, _) in enumerate(taps[ph]):
                r0 = (4 * ph + ti) * C
                off = 1 + (1 + dh) * W + dw                # static lane offset
                piece = y[r0:r0 + C, off:off + HtW]        # (C, HtW)
                if dw == -1:
                    piece = piece * keep_m1                # w==0 column invalid
                elif dw == 1:
                    piece = piece * keep_p1                # w==W-1 column invalid
                acc = piece if acc is None else acc + piece
            out_ref[0, ph] = (acc + bnb).astype(out_ref.dtype)

    return kernel


def _waveblock_call(wins, wmask, params, *, B, H, W, Ht, C, Cm, K, out_dtype):
    n_t = H // Ht
    He = Ht + 2
    Wp = He * W + 2
    HtW = Ht * W
    taps = _conv_t_taps()
    kernel = _make_kernel(W=W, Ht=Ht, C=C, Cm=Cm, K=K, taps=taps)

    wf, bf, wct, bnb = params['wf'], params['bf'], params['wct'], params['bnb']

    def cmap2(b, t):
        return (0, 0)

    return pl.pallas_call(
        kernel,
        out_shape=jax.ShapeDtypeStruct((B, 4, C, H * W), out_dtype),
        grid=(B, n_t),
        in_specs=[
            pl.BlockSpec((1, 1, K, Wp), lambda b, t: (b, t, 0, 0)),
            pl.BlockSpec(wmask.shape, cmap2),
            pl.BlockSpec(wf.shape, cmap2),
            pl.BlockSpec(bf.shape, cmap2),
            pl.BlockSpec(wct.shape, cmap2),
            pl.BlockSpec(bnb.shape, cmap2),
        ],
        out_specs=pl.BlockSpec((1, 4, C, HtW), lambda b, t: (b, 0, 0, t)),
        compiler_params=pltpu.CompilerParams(
            dimension_semantics=("parallel", "parallel"),
            vmem_limit_bytes=_vmem_limit_bytes()),
    )(wins, wmask, wf, bf, wct, bnb)


# ---------------------------------------------------------------------------
# Wrapper
def fsmd_forward(x, y, params, *, h_tile=None, out_dtype=jnp.bfloat16):
    """FSMD forward: y = up(y); z = cat([x, y], 1); FSM wavelet-conv branch of z.

    x: (B, Cx, 2H, 2W) NCHW, y: (B, Cy, H, W) NCHW -> out (B, Cx+Cy, 2H, 2W).
    """
    B, Cx, H2, W2 = x.shape
    By, Cy, H, W = y.shape
    assert B == By and (H2, W2) == (2 * H, 2 * W), "x must be the 2x-resolution input"
    C = Cx + Cy
    Cm, K = params['wf'].shape
    assert K == 4 * Cx + Cy and params['bnb'].shape[0] == C

    if h_tile is None:
        h_tile = _pick_h_tile(B, H, W, C=C, Cm=Cm, K=K)
    Ht = h_tile
    assert H % Ht == 0, (H, Ht)
    assert Ht == H or (Ht * W) % 128 == 0, "output tile must be 128-lane aligned"
    n_t = H // Ht
    He = Ht + 2

    # NCHW-native preprocessing (single XLA transpose of x, none for y):
    # fold the 2x2 sub-pixel phases of x into channels and append y.  The
    # nearest-neighbour Upsample(scale=2) of y is phase-shared and is folded
    # into the fused front weight, so y appears only once here.
    bf16 = jnp.bfloat16
    zx = (x.astype(bf16).reshape(B, Cx, H, 2, W, 2)
            .transpose(0, 3, 5, 1, 2, 4)
            .reshape(B, 4 * Cx, H, W))
    z = jnp.concatenate([zx, y.astype(bf16)], axis=1)         # (B, K, H, W)
    z = jnp.pad(z, ((0, 0), (0, 0), (1, 1), (0, 0)))          # halo rows (zeros)
    zf = z.reshape(B, K, (H + 2) * W)                         # free reshape

    # materialise per-tile halo windows (lane-dense, one activation stream,
    # ~2/Ht duplication) and add a +-1 zero guard lane for the corner taps.
    wins = jnp.stack([zf[:, :, t * Ht * W: t * Ht * W + He * W]
                      for t in range(n_t)], axis=1)           # (B, n_t, K, He*W)
    wins = jnp.pad(wins, ((0, 0), (0, 0), (0, 0), (1, 1)))

    # precomputed W-boundary masks for the dw=+-1 ConvT taps
    wcol = jnp.tile(jnp.arange(W, dtype=jnp.int32), Ht)
    wmask = jnp.stack([wcol != 0, wcol != W - 1]).astype(jnp.float32)  # (2, Ht*W)

    out_ph = _waveblock_call(wins, wmask, params, B=B, H=H, W=W, Ht=Ht,
                             C=C, Cm=Cm, K=K, out_dtype=out_dtype)
    # (B, 4, C, H*W) -> NCHW with the 2x2 phases re-interleaved (one XLA pass)
    out = (out_ph.reshape(B, 2, 2, C, H, W)
                 .transpose(0, 3, 4, 1, 5, 2)
                 .reshape(B, C, 2 * H, 2 * W))
    return out


# ---------------------------------------------------------------------------
# Parameter construction (torch-layout randoms, folded into kernel layout)
def init_params(key, in_channels, x_channels, mult=1):
    """Random weights for the FSM conv branch (Level1Waveblock), pre-composed."""
    C = in_channels
    Cx = x_channels
    Cy = C - Cx
    assert 0 < Cx < C and C % 4 == 0
    C4 = C // 4
    Cm = C * mult
    ks = jax.random.split(key, 10)

    # torch-layout weights
    wred_t = 0.2 * jax.random.normal(ks[0], (C4, C), jnp.float32)      # Conv2d(C, C//4, 1)
    bred = 0.1 * jax.random.normal(ks[1], (C4,), jnp.float32)
    w1_t = 0.2 * jax.random.normal(ks[2], (Cm, C), jnp.float32)        # Conv2d(C, C*mult, 1)
    b1 = 0.1 * jax.random.normal(ks[3], (Cm,), jnp.float32)
    wct_t = 0.2 * jax.random.normal(ks[4], (Cm, C, 4, 4), jnp.float32)  # ConvTranspose2d
    bct = 0.1 * jax.random.normal(ks[5], (C,), jnp.float32)
    gamma = 1.0 + 0.1 * jax.random.normal(ks[6], (C,), jnp.float32)
    beta = 0.1 * jax.random.normal(ks[7], (C,), jnp.float32)
    rmean = 0.1 * jax.random.normal(ks[8], (C,), jnp.float32)
    rvar = 1.0 + 0.5 * jax.random.uniform(ks[9], (C,), jnp.float32)

    # --- pre-compose: reduction conv o Haar DWT o feed-forward conv ----------
    wred = wred_t.T                       # (C, C4) rows = [x channels | y channels]
    wred_x, wred_y = wred[:Cx], wred[Cx:]
    w1 = w1_t.T                           # (C, Cm) rows in torch DWT channel order
    # TODO(synk): band order / signs assume pytorch_wavelets' (LH,HL,HH) stacking;
    #             validate against DWTForward if bit-exact torch parity is needed.
    w1_ll = w1[:C4]
    w1_b = [w1[jnp.array([C4 + 3 * ch + band for ch in range(C4)])] for band in range(3)]
    # per sub-pixel phase composed (C4, Cm) weights, phase order (0,0),(0,1),(1,0),(1,1)
    signs = ((1, 1, 1), (1, -1, -1), (-1, 1, -1), (-1, -1, 1))
    w_phase = [0.5 * (w1_ll + s0 * w1_b[0] + s1 * w1_b[1] + s2 * w1_b[2])
               for (s0, s1, s2) in signs]
    wf = jnp.concatenate([wred_x @ wp for wp in w_phase]
                         + [wred_y @ (2.0 * w1_ll)], axis=0)   # (K, Cm)
    bf = bred @ (2.0 * w1_ll) + b1                             # (Cm,)

    # --- eval-mode BatchNorm folded: scale into the ConvT weight, shift kept --
    bns = gamma / jnp.sqrt(rvar + 1e-5)
    bnb = beta - rmean * bns + bct * bns                       # ConvT bias folded in
    taps = _conv_t_taps()
    rows = []
    for ph in range(4):
        for (_, _, kh, kw) in taps[ph]:
            rows.append((bns[None, :] * wct_t[:, :, kh, kw]).T)  # (C, Cm)
    wct = jnp.concatenate(rows, axis=0)                          # (16*C, Cm)

    bf16 = jnp.bfloat16
    return dict(
        wf=wf.T.astype(bf16),            # (Cm, 4*Cx+Cy)
        bf=bf.reshape(Cm, 1),            # f32
        wct=wct.astype(bf16),            # (16*C, Cm), BN-scale pre-folded
        bnb=bnb.reshape(C, 1))           # f32


if __name__ == "__main__":
    key = jax.random.PRNGKey(0)
    kx, ky, kp = jax.random.split(key, 3)
    Cx, Cy = 8, 8
    in_channels = Cx + Cy          # channels seen by FSM after cat([x, up(y)])
    mult = 1                       # FSM default
    B, H, W = 2, 16, 16            # y is low-res (B, Cy, H, W); x is (B, Cx, 2H, 2W)
    x = jax.random.normal(kx, (B, Cx, 2 * H, 2 * W), jnp.float32)
    y = jax.random.normal(ky, (B, Cy, H, W), jnp.float32)
    params = init_params(kp, in_channels, Cx, mult)

    fwd = jax.jit(fsmd_forward, static_argnames=("h_tile",))
    out = fwd(x, y, params, h_tile=8)   # grid (B=2, n_t=2) -> exercises the halo path
    out = jax.block_until_ready(out)
    assert out.shape == (B, in_channels, 2 * H, 2 * W), out.shape
    assert bool(jnp.all(jnp.isfinite(out.astype(jnp.float32))))
    print("KERNEL_OK")
</pallas_src>

<mosaic_0001>
module attributes {stable_mosaic.version = 11 : i64} {
  func.func @kernel(%arg0: i32, %arg1: i32, %arg2: memref<1x1x40x162xbf16, #tpu.memory_space<vmem>>, %arg3: memref<2x128xf32, #tpu.memory_space<vmem>>, %arg4: memref<16x40xbf16, #tpu.memory_space<vmem>>, %arg5: memref<16x1xf32, #tpu.memory_space<vmem>>, %arg6: memref<256x16xbf16, #tpu.memory_space<vmem>>, %arg7: memref<16x1xf32, #tpu.memory_space<vmem>>, %arg8: memref<1x4x16x128xbf16, #tpu.memory_space<vmem>>) attributes {dimension_semantics = [#tpu.dimension_semantics<parallel>, #tpu.dimension_semantics<parallel>], iteration_bounds = array<i64: 2, 2>, scalar_prefetch = 0 : i64, scratch_operands = 0 : i64, tpu.core_type = #tpu.core_type<tc>, window_params = [{transform_indices = @transform_0, window_bounds = array<i64: 1, 1, 40, 162>}, {pipeline_mode = #tpu.pipeline_mode<synchronous>, transform_indices = @transform_1, window_bounds = array<i64: 2, 128>}, {pipeline_mode = #tpu.pipeline_mode<synchronous>, transform_indices = @transform_2, window_bounds = array<i64: 16, 40>}, {pipeline_mode = #tpu.pipeline_mode<synchronous>, transform_indices = @transform_3, window_bounds = array<i64: 16, 1>}, {pipeline_mode = #tpu.pipeline_mode<synchronous>, transform_indices = @transform_4, window_bounds = array<i64: 256, 16>}, {pipeline_mode = #tpu.pipeline_mode<synchronous>, transform_indices = @transform_5, window_bounds = array<i64: 16, 1>}, {transform_indices = @transform_6, window_bounds = array<i64: 1, 4, 16, 128>}]} {
    %c0 = arith.constant 0 : index
    %c0_0 = arith.constant 0 : index
    %c0_1 = arith.constant 0 : index
    %c0_2 = arith.constant 0 : index
    %0 = vector.load %arg2[%c0, %c0_0, %c0_1, %c0_2] : memref<1x1x40x162xbf16, #tpu.memory_space<vmem>>, vector<1x1x40x162xbf16>
    %1 = vector.shape_cast %0 : vector<1x1x40x162xbf16> to vector<40x162xbf16>
    %c0_3 = arith.constant 0 : index
    %c0_4 = arith.constant 0 : index
    %2 = vector.load %arg4[%c0_3, %c0_4] : memref<16x40xbf16, #tpu.memory_space<vmem>>, vector<16x40xbf16>
    %cst = arith.constant dense<0.000000e+00> : vector<16x162xf32>
    %3 = tpu.matmul %2, %1, %cst {dimension_numbers = #tpu.dot_dimension_numbers<[1], [0], [0], [1], [0, 0, 1, 1], [], []>} : vector<16x40xbf16>, vector<40x162xbf16>, vector<16x162xf32> -> vector<16x162xf32>
    %c0_5 = arith.constant 0 : index
    %c0_6 = arith.constant 0 : index
    %4 = vector.load %arg5[%c0_5, %c0_6] : memref<16x1xf32, #tpu.memory_space<vmem>>, vector<16x1xf32>
    %5 = vector.broadcast %4 : vector<16x1xf32> to vector<16x162xf32>
    %6 = arith.addf %3, %5 : vector<16x162xf32>
    %7 = arith.mulf %6, %6 : vector<16x162xf32>
    %8 = arith.mulf %7, %6 : vector<16x162xf32>
    %cst_7 = arith.constant 4.471500e-02 : f32
    %9 = vector.broadcast %cst_7 : f32 to vector<16x162xf32>
    %10 = arith.mulf %9, %8 : vector<16x162xf32>
    %11 = arith.addf %6, %10 : vector<16x162xf32>
    %cst_8 = arith.constant 0.797884583 : f32
    %12 = vector.broadcast %cst_8 : f32 to vector<16x162xf32>
    %13 = arith.mulf %12, %11 : vector<16x162xf32>
    %cst_9 = arith.constant 5.000000e-01 : f32
    %14 = vector.broadcast %cst_9 : f32 to vector<16x162xf32>
    %15 = arith.mulf %14, %6 : vector<16x162xf32>
    %16 = math.tanh %13 : vector<16x162xf32>
    %cst_10 = arith.constant 1.000000e+00 : f32
    %17 = vector.broadcast %cst_10 : f32 to vector<16x162xf32>
    %18 = arith.addf %17, %16 : vector<16x162xf32>
    %19 = arith.mulf %15, %18 : vector<16x162xf32>
    %20 = tpu.iota {dimensions = array<i32: 1>} : vector<1x162xi32>
    %c1_i32 = arith.constant 1 : i32
    %21 = vector.broadcast %c1_i32 : i32 to vector<1x162xi32>
    %22 = arith.subi %20, %21 : vector<1x162xi32>
    %c1_i32_11 = arith.constant 1 : i32
    %23 = vector.broadcast %c1_i32_11 : i32 to vector<1x162xi32>
    %24 = arith.cmpi sge, %20, %23 : vector<1x162xi32>
    %c160_i32 = arith.constant 160 : i32
    %25 = vector.broadcast %c160_i32 : i32 to vector<1x162xi32>
    %26 = arith.cmpi sle, %20, %25 : vector<1x162xi32>
    %27 = arith.andi %24, %26 : vector<1x162xi1>
    %c16_i32 = arith.constant 16 : i32
    %28 = vector.broadcast %c16_i32 : i32 to vector<1x162xi32>
    %29 = arith.cmpi sge, %22, %28 : vector<1x162xi32>
    %c0_i32 = arith.constant 0 : i32
    %30 = arith.cmpi sgt, %arg1, %c0_i32 : i32
    %31 = vector.broadcast %30 : i1 to vector<1x162xi1>
    %32 = arith.ori %29, %31 : vector<1x162xi1>
    %c144_i32 = arith.constant 144 : i32
    %33 = vector.broadcast %c144_i32 : i32 to vector<1x162xi32>
    %34 = arith.cmpi slt, %22, %33 : vector<1x162xi32>
    %c1_i32_12 = arith.constant 1 : i32
    %35 = arith.cmpi slt, %arg1, %c1_i32_12 : i32
    %36 = vector.broadcast %35 : i1 to vector<1x162xi1>
    %37 = arith.ori %34, %36 : vector<1x162xi1>
    %38 = arith.andi %32, %37 : vector<1x162xi1>
    %39 = arith.andi %27, %38 : vector<1x162xi1>
    %cst_13 = arith.constant 0.000000e+00 : f32
    %40 = vector.shape_cast %39 : vector<1x162xi1> to vector<1x162xi1>
    %41 = vector.broadcast %40 : vector<1x162xi1> to vector<16x162xi1>
    %42 = vector.broadcast %cst_13 : f32 to vector<16x162xf32>
    %43 = arith.select %41, %19, %42 : vector<16x162xi1>, vector<16x162xf32>
    %c0_14 = arith.constant 0 : index
    %c0_15 = arith.constant 0 : index
    %44 = vector.load %arg6[%c0_14, %c0_15] : memref<256x16xbf16, #tpu.memory_space<vmem>>, vector<256x16xbf16>
    %45 = arith.truncf %43 : vector<16x162xf32> to vector<16x162xbf16>
    %cst_16 = arith.constant dense<0.000000e+00> : vector<256x162xf32>
    %46 = tpu.matmul %44, %45, %cst_16 {dimension_numbers = #tpu.dot_dimension_numbers<[1], [0], [0], [1], [0, 0, 1, 1], [], []>} : vector<256x16xbf16>, vector<16x162xbf16>, vector<256x162xf32> -> vector<256x162xf32>
    %c0_17 = arith.constant 0 : index
    %c0_18 = arith.constant 0 : index
    %47 = vector.load %arg3[%c0_17, %c0_18] : memref<2x128xf32, #tpu.memory_space<vmem>>, vector<1x128xf32>
    %c1 = arith.constant 1 : index
    %c0_19 = arith.constant 0 : index
    %48 = vector.load %arg3[%c1, %c0_19] : memref<2x128xf32, #tpu.memory_space<vmem>>, vector<1x128xf32>
    %c0_20 = arith.constant 0 : index
    %c0_21 = arith.constant 0 : index
    %49 = vector.load %arg7[%c0_20, %c0_21] : memref<16x1xf32, #tpu.memory_space<vmem>>, vector<16x1xf32>
    %50 = vector.extract_strided_slice %46 {offsets = [0, 0], sizes = [16, 128], strides = [1, 1]} : vector<256x162xf32> to vector<16x128xf32>
    %51 = vector.broadcast %47 : vector<1x128xf32> to vector<16x128xf32>
    %52 = arith.mulf %50, %51 : vector<16x128xf32>
    %53 = vector.extract_strided_slice %46 {offsets = [16, 1], sizes = [16, 128], strides = [1, 1]} : vector<256x162xf32> to vector<16x128xf32>
    %54 = arith.addf %52, %53 : vector<16x128xf32>
    %55 = vector.extract_strided_slice %46 {offsets = [32, 16], sizes = [16, 128], strides = [1, 1]} : vector<256x162xf32> to vector<16x128xf32>
    %56 = vector.broadcast %47 : vector<1x128xf32> to vector<16x128xf32>
    %57 = arith.mulf %55, %56 : vector<16x128xf32>
    %58 = arith.addf %54, %57 : vector<16x128xf32>
    %59 = vector.extract_strided_slice %46 {offsets = [48, 17], sizes = [16, 128], strides = [1, 1]} : vector<256x162xf32> to vector<16x128xf32>
    %60 = arith.addf %58, %59 : vector<16x128xf32>
    %61 = vector.broadcast %49 : vector<16x1xf32> to vector<16x128xf32>
    %62 = arith.addf %60, %61 : vector<16x128xf32>
    %63 = arith.truncf %62 : vector<16x128xf32> to vector<16x128xbf16>
    %c0_22 = arith.constant 0 : index
    %c0_23 = arith.constant 0 : index
    %c0_24 = arith.constant 0 : index
    %c0_25 = arith.constant 0 : index
    %64 = vector.load %arg8[%c0_22, %c0_23, %c0_24, %c0_25] : memref<1x4x16x128xbf16, #tpu.memory_space<vmem>>, vector<1x1x16x128xbf16>
    %65 = vector.shape_cast %64 : vector<1x1x16x128xbf16> to vector<16x128xbf16>
    %66 = vector.shape_cast %63 : vector<16x128xbf16> to vector<1x1x16x128xbf16>
    tpu.vector_store %arg8[%c0_22, %c0_23, %c0_24, %c0_25], %66 {strides = array<i32>} : memref<1x4x16x128xbf16, #tpu.memory_space<vmem>>, vector<1x1x16x128xbf16>,
    %67 = vector.extract_strided_slice %46 {offsets = [64, 1], sizes = [16, 128], strides = [1, 1]} : vector<256x162xf32> to vector<16x128xf32>
    %68 = vector.extract_strided_slice %46 {offsets = [80, 2], sizes = [16, 128], strides = [1, 1]} : vector<256x162xf32> to vector<16x128xf32>
    %69 = vector.broadcast %48 : vector<1x128xf32> to vector<16x128xf32>
    %70 = arith.mulf %68, %69 : vector<16x128xf32>
    %71 = arith.addf %67, %70 : vector<16x128xf32>
    %72 = vector.extract_strided_slice %46 {offsets = [96, 17], sizes = [16, 128], strides = [1, 1]} : vector<256x162xf32> to vector<16x128xf32>
    %73 = arith.addf %71, %72 : vector<16x128xf32>
    %74 = vector.extract_strided_slice %46 {offsets = [112, 18], sizes = [16, 128], strides = [1, 1]} : vector<256x162xf32> to vector<16x128xf32>
    %75 = vector.broadcast %48 : vector<1x128xf32> to vector<16x128xf32>
    %76 = arith.mulf %74, %75 : vector<16x128xf32>
    %77 = arith.addf %73, %76 : vector<16x128xf32>
    %78 = vector.broadcast %49 : vector<16x1xf32> to vector<16x128xf32>
    %79 = arith.addf %77, %78 : vector<16x128xf32>
    %80 = arith.truncf %79 : vector<16x128xf32> to vector<16x128xbf16>
    %c0_26 = arith.constant 0 : index
    %c1_27 = arith.constant 1 : index
    %c0_28 = arith.constant 0 : index
    %c0_29 = arith.constant 0 : index
    %81 = vector.load %arg8[%c0_26, %c1_27, %c0_28, %c0_29] : memref<1x4x16x128xbf16, #tpu.memory_space<vmem>>, vector<1x1x16x128xbf16>
    %82 = vector.shape_cast %81 : vector<1x1x16x128xbf16> to vector<16x128xbf16>
    %83 = vector.shape_cast %80 : vector<16x128xbf16> to vector<1x1x16x128xbf16>
    tpu.vector_store %arg8[%c0_26, %c1_27, %c0_28, %c0_29], %83 {strides = array<i32>} : memref<1x4x16x128xbf16, #tpu.memory_space<vmem>>, vector<1x1x16x128xbf16>,
    %84 = vector.extract_strided_slice %46 {offsets = [128, 16], sizes = [16, 128], strides = [1, 1]} : vector<256x162xf32> to vector<16x128xf32>
    %85 = vector.broadcast %47 : vector<1x128xf32> to vector<16x128xf32>
    %86 = arith.mulf %84, %85 : vector<16x128xf32>
    %87 = vector.extract_strided_slice %46 {offsets = [144, 17], sizes = [16, 128], strides = [1, 1]} : vector<256x162xf32> to vector<16x128xf32>
    %88 = arith.addf %86, %87 : vector<16x128xf32>
    %89 = vector.extract_strided_slice %46 {offsets = [160, 32], sizes = [16, 128], strides = [1, 1]} : vector<256x162xf32> to vector<16x128xf32>
    %90 = vector.broadcast %47 : vector<1x128xf32> to vector<16x128xf32>
    %91 = arith.mulf %89, %90 : vector<16x128xf32>
    %92 = arith.addf %88, %91 : vector<16x128xf32>
    %93 = vector.extract_strided_slice %46 {offsets = [176, 33], sizes = [16, 128], strides = [1, 1]} : vector<256x162xf32> to vector<16x128xf32>
    %94 = arith.addf %92, %93 : vector<16x128xf32>
    %95 = vector.broadcast %49 : vector<16x1xf32> to vector<16x128xf32>
    %96 = arith.addf %94, %95 : vector<16x128xf32>
    %97 = arith.truncf %96 : vector<16x128xf32> to vector<16x128xbf16>
    %c0_30 = arith.constant 0 : index
    %c2 = arith.constant 2 : index
    %c0_31 = arith.constant 0 : index
    %c0_32 = arith.constant 0 : index
    %98 = vector.load %arg8[%c0_30, %c2, %c0_31, %c0_32] : memref<1x4x16x128xbf16, #tpu.memory_space<vmem>>, vector<1x1x16x128xbf16>
    %99 = vector.shape_cast %98 : vector<1x1x16x128xbf16> to vector<16x128xbf16>
    %100 = vector.shape_cast %97 : vector<16x128xbf16> to vector<1x1x16x128xbf16>
    tpu.vector_store %arg8[%c0_30, %c2, %c0_31, %c0_32], %100 {strides = array<i32>} : memref<1x4x16x128xbf16, #tpu.memory_space<vmem>>, vector<1x1x16x128xbf16>,
    %101 = vector.extract_strided_slice %46 {offsets = [192, 17], sizes = [16, 128], strides = [1, 1]} : vector<256x162xf32> to vector<16x128xf32>
    %102 = vector.extract_strided_slice %46 {offsets = [208, 18], sizes = [16, 128], strides = [1, 1]} : vector<256x162xf32> to vector<16x128xf32>
    %103 = vector.broadcast %48 : vector<1x128xf32> to vector<16x128xf32>
    %104 = arith.mulf %102, %103 : vector<16x128xf32>
    %105 = arith.addf %101, %104 : vector<16x128xf32>
    %106 = vector.extract_strided_slice %46 {offsets = [224, 33], sizes = [16, 128], strides = [1, 1]} : vector<256x162xf32> to vector<16x128xf32>
    %107 = arith.addf %105, %106 : vector<16x128xf32>
    %108 = vector.extract_strided_slice %46 {offsets = [240, 34], sizes = [16, 128], strides = [1, 1]} : vector<256x162xf32> to vector<16x128xf32>
    %109 = vector.broadcast %48 : vector<1x128xf32> to vector<16x128xf32>
    %110 = arith.mulf %108, %109 : vector<16x128xf32>
    %111 = arith.addf %107, %110 : vector<16x128xf32>
    %112 = vector.broadcast %49 : vector<16x1xf32> to vector<16x128xf32>
    %113 = arith.addf %111, %112 : vector<16x128xf32>
    %114 = arith.truncf %113 : vector<16x128xf32> to vector<16x128xbf16>
    %c0_33 = arith.constant 0 : index
    %c3 = arith.constant 3 : index
    %c0_34 = arith.constant 0 : index
    %c0_35 = arith.constant 0 : index
    %115 = vector.load %arg8[%c0_33, %c3, %c0_34, %c0_35] : memref<1x4x16x128xbf16, #tpu.memory_space<vmem>>, vector<1x1x16x128xbf16>
    %116 = vector.shape_cast %115 : vector<1x1x16x128xbf16> to vector<16x128xbf16>
    %117 = vector.shape_cast %114 : vector<16x128xbf16> to vector<1x1x16x128xbf16>
    tpu.vector_store %arg8[%c0_33, %c3, %c0_34, %c0_35], %117 {strides = array<i32>} : memref<1x4x16x128xbf16, #tpu.memory_space<vmem>>, vector<1x1x16x128xbf16>,
    return
  }
  func.func @transform_0(%arg0: i32, %arg1: i32) -> (i32, i32, i32, i32) {
    %c0_i32 = arith.constant 0 : i32
    %c0_i32_0 = arith.constant 0 : i32
    %c0_i32_1 = arith.constant 0 : i32
    return %arg0, %arg1, %c0_i32, %c0_i32_0 : i32, i32, i32, i32
  }
  func.func @transform_1(%arg0: i32, %arg1: i32) -> (i32, i32) {
    %c0_i32 = arith.constant 0 : i32
    %c0_i32_0 = arith.constant 0 : i32
    %c0_i32_1 = arith.constant 0 : i32
    return %c0_i32, %c0_i32_0 : i32, i32
  }
  func.func @transform_2(%arg0: i32, %arg1: i32) -> (i32, i32) {
    %c0_i32 = arith.constant 0 : i32
    %c0_i32_0 = arith.constant 0 : i32
    %c0_i32_1 = arith.constant 0 : i32
    return %c0_i32, %c0_i32_0 : i32, i32
  }
  func.func @transform_3(%arg0: i32, %arg1: i32) -> (i32, i32) {
    %c0_i32 = arith.constant 0 : i32
    %c0_i32_0 = arith.constant 0 : i32
    %c0_i32_1 = arith.constant 0 : i32
    return %c0_i32, %c0_i32_0 : i32, i32
  }
  func.func @transform_4(%arg0: i32, %arg1: i32) -> (i32, i32) {
    %c0_i32 = arith.constant 0 : i32
    %c0_i32_0 = arith.constant 0 : i32
    %c0_i32_1 = arith.constant 0 : i32
    return %c0_i32, %c0_i32_0 : i32, i32
  }
  func.func @transform_5(%arg0: i32, %arg1: i32) -> (i32, i32) {
    %c0_i32 = arith.constant 0 : i32
    %c0_i32_0 = arith.constant 0 : i32
    %c0_i32_1 = arith.constant 0 : i32
    return %c0_i32, %c0_i32_0 : i32, i32
  }
  func.func @transform_6(%arg0: i32, %arg1: i32) -> (i32, i32, i32, i32) {
    %c0_i32 = arith.constant 0 : i32
    %c0_i32_0 = arith.constant 0 : i32
    %c0_i32_1 = arith.constant 0 : i32
    return %arg0, %c0_i32, %c0_i32_0, %arg1 : i32, i32, i32, i32
  }
}

</mosaic_0001>

<llo_original>
// kernel: fsmd_forward.1
$region0: #{fsmd_forward.1}
  #allocation0 [shape = 'u32[]', space=smem, size = 0x4, offset = 0x4, fixed_abs, tag = 'smem constant byte address 0x4 - core index']
  #allocation1 [shape = 'u32[144,128]{1,0:T(1,128)}', space=vmem, size = 0x12000, scoped, tag = 'internal scratch']
  %s0 = inlined_call_operand.hbm [shape: bf16[2,2,40,162], index: 0, kind: input, shape index: {}]
  %s1 = inlined_call_operand.hbm [shape: f32[2,128], index: 1, kind: input, shape index: {}]
  %s2 = inlined_call_operand.hbm [shape: bf16[16,40], index: 2, kind: input, shape index: {}]
  %s3 = inlined_call_operand.hbm [shape: f32[16,1], index: 3, kind: input, shape index: {}]
  %s4 = inlined_call_operand.hbm [shape: bf16[256,16], index: 4, kind: input, shape index: {}]
  %s5 = inlined_call_operand.hbm [shape: f32[16,1], index: 5, kind: input, shape index: {}]
  %s6 = inlined_call_operand.hbm [shape: bf16[2,4,16,256], index: 6, kind: output, shape index: {}]
  %s7 = sld [smem:[#allocation0]]
  $region81: #{fsmd_forward.1} parent=0
    _
  %s9 = ssub.s32 1, %s7
  %s10 = scalar_select 0, %s9, %s7
  $region1: #{fsmd_forward.1} parent=0
    #allocation2 [shape = 'u8[40960]{0}', space=vmem, size = 0xa000, scoped, tag = 'input window, operand 0']
    #allocation3 [shape = 's32[2]{0}', space=sflag, size = 0x8, scoped, tag = 'scoped memory for fsmd_forward.1']
    #allocation4 [shape = 's32[2]{0}', space=sflag, size = 0x8, scoped, tag = 'scoped memory for fsmd_forward.1']
    #allocation5 [shape = 'u8[1024]{0}', space=vmem, size = 0x400, scoped, tag = 'input window, operand 1, single buffered']
    #allocation6 [shape = 's32[1]{0}', space=sflag, size = 0x4, scoped, tag = 'scoped memory for fsmd_forward.1']
    #allocation7 [shape = 'u8[4096]{0}', space=vmem, size = 0x1000, scoped, tag = 'input window, operand 2, single buffered']
    #allocation8 [shape = 'u8[8192]{0}', space=vmem, size = 0x2000, scoped, tag = 'input window, operand 3, single buffered']
    #allocation9 [shape = 's32[1]{0}', space=sflag, size = 0x4, scoped, tag = 'scoped memory for fsmd_forward.1']
    #allocation10 [shape = 'u8[65536]{0}', space=vmem, size = 0x10000, scoped, tag = 'input window, operand 4, single buffered']
    #allocation11 [shape = 'u8[8192]{0}', space=vmem, size = 0x2000, scoped, tag = 'input window, operand 5, single buffered']
    #allocation12 [shape = 's32[1]{0}', space=sflag, size = 0x4, scoped, tag = 'scoped memory for fsmd_forward.1']
    #allocation13 [shape = 'u8[32768]{0}', space=vmem, size = 0x8000, scoped, tag = 'output window, operand 0']
    %11 = vsyncpa [#allocation3], 0
    %s12 = scalar_lea.sflag [#allocation3], 1
    %13 = vsyncpa %s12, 0
    %14 = vsyncpa [#allocation6], 0
    %15 = vsyncpa [#allocation9], 0
    %16 = vsyncpa [#allocation12], 0
    %17 = vsyncpa [#allocation4], 0
    %s18 = scalar_lea.sflag [#allocation4], 1
    %19 = vsyncpa %s18, 0
    loop: start=0, step=1, limit=6
    $region2: #{fsmd_forward.1} parent=1 // loop_pre_header
      _
    $region3: #{fsmd_forward.1} parent=1 // loop_header
      %s21 = sphi 0, %s25
      %p22 = scmp.ge.s32.totalorder %s21, 6
      %s28 = sphi 0, %s40
      %s29 = sphi 0, %s36
      %s30 = sphi 0, %s28
      %s31 = sphi 0, %s29
      %s32 = sphi 0, %s30
      %s33 = sphi 0, %s31
      %s45 = sphi 0, %s47
      %s48 = sphi 0, %s45
      %s49 = sphi 0, %s48
      %s65 = sphi 0, %s49
      %s69 = sphi 0, %s69
      %s71 = sphi 0, %s69
      %s72 = sphi 0, %s71
      %s86 = sphi 0, %s72
      %s90 = sphi 0, %s90
      %s92 = sphi 0, %s90
      %s93 = sphi 0, %s92
      %s107 = sphi 0, %s93
      %s111 = sphi 0, %s111
      %s113 = sphi 0, %s111
      %s114 = sphi 0, %s113
      %s128 = sphi 0, %s114
      %s132 = sphi 0, %s132
      %s134 = sphi 0, %s132
      %s135 = sphi 0, %s134
      %s149 = sphi 0, %s135
      %s153 = sphi 0, %s153
      %s155 = sphi 0, %s153
      %s156 = sphi 0, %s155
      %s170 = sphi 0, %s156
      %s178 = sphi 0, %s180
      %s181 = sphi 0, %s178
      %s182 = sphi 0, %s181
      %s198 = sphi 0, %s182
    $region4: #{fsmd_forward.1} parent=1 // loop_header_branch
      %24 = sbr.rel (%p22) target = $region8
    $region5: #{fsmd_forward.1} parent=1 // loop_body
      %s26 = ssub.s32 %s21, 1
      %s27 = ssub.s32 %s21, 2
      %s34 = sadd.s32 1, %s29
      %p35 = scmp.ge.s32.totalorder %s34, 2
      %s36 = scalar_select %p35, 0, %s34
      %s37 = sadd.s32 1, %s28
      %s38 = scalar_select %p35, %s37, %s28
      %p39 = scmp.ge.s32.totalorder %s38, 2
      %s40 = scalar_select %p39, 0, %s38
      %s41 = ssub.s32 %s28, %s40
      %s42 = ssub.s32 %s29, %s36
      %s43 = sor.u32 %s41, %s42
      %p44 = scmp.eq.s32.totalorder %s43, 0
      %s46 = sadd.s32 %s45, 1
      %s47 = scalar_select %p44, %s45, %s46
      %p50 = pneg %p44
      %p51 = scmp.eq.s32.totalorder %s21, 3
      %p52 = por %p50, %p51
      %p53 = scmp.ne.s32.totalorder %s45, %s48
      %p54 = scmp.eq.s32.totalorder %s21, 0
      %p55 = por %p53, %p54
      %p56 = scmp.ne.s32.totalorder %s45, %s48
      %p57 = scmp.eq.s32.totalorder %s26, 3
      %p58 = por %p56, %p57
      %p59 = scmp.ne.s32.totalorder %s48, %s49
      %p60 = scmp.eq.s32.totalorder %s26, 0
      %p61 = por %p59, %p60
      %p62 = scmp.ne.s32.totalorder %s48, %s49
      %p63 = scmp.eq.s32.totalorder %s27, 3
      %p64 = por %p62, %p63
      %p66 = scmp.ne.s32.totalorder %s49, %s65
      %p67 = scmp.eq.s32.totalorder %s27, 0
      %p68 = por %p66, %p67
      %s70 = sadd.s32 %s69, 1
      %p73 = scmp.eq.s32.totalorder %s21, 3
      %p74 = scmp.ne.s32.totalorder %s69, %s71
      %p75 = scmp.eq.s32.totalorder %s21, 0
      %p76 = por %p74, %p75
      %p77 = scmp.ne.s32.totalorder %s69, %s71
      %p78 = scmp.eq.s32.totalorder %s26, 3
      %p79 = por %p77, %p78
      %p80 = scmp.ne.s32.totalorder %s71, %s72
      %p81 = scmp.eq.s32.totalorder %s26, 0
      %p82 = por %p80, %p81
      %p83 = scmp.ne.s32.totalorder %s71, %s72
      %p84 = scmp.eq.s32.totalorder %s27, 3
      %p85 = por %p83, %p84
      %p87 = scmp.ne.s32.totalorder %s72, %s86
      %p88 = scmp.eq.s32.totalorder %s27, 0
      %p89 = por %p87, %p88
      %s91 = sadd.s32 %s90, 1
      %p94 = scmp.eq.s32.totalorder %s21, 3
      %p95 = scmp.ne.s32.totalorder %s90, %s92
      %p96 = scmp.eq.s32.totalorder %s21, 0
      %p97 = por %p95, %p96
      %p98 = scmp.ne.s32.totalorder %s90, %s92
      %p99 = scmp.eq.s32.totalorder %s26, 3
      %p100 = por %p98, %p99
      %p101 = scmp.ne.s32.totalorder %s92, %s93
      %p102 = scmp.eq.s32.totalorder %s26, 0
      %p103 = por %p101, %p102
      %p104 = scmp.ne.s32.totalorder %s92, %s93
      %p105 = scmp.eq.s32.totalorder %s27, 3
      %p106 = por %p104, %p105
      %p108 = scmp.ne.s32.totalorder %s93, %s107
      %p109 = scmp.eq.s32.totalorder %s27, 0
      %p110 = por %p108, %p109
      %s112 = sadd.s32 %s111, 1
      %p115 = scmp.eq.s32.totalorder %s21, 3
      %p116 = scmp.ne.s32.totalorder %s111, %s113
      %p117 = scmp.eq.s32.totalorder %s21, 0
      %p118 = por %p116, %p117
      %p119 = scmp.ne.s32.totalorder %s111, %s113
      %p120 = scmp.eq.s32.totalorder %s26, 3
      %p121 = por %p119, %p120
      %p122 = scmp.ne.s32.totalorder %s113, %s114
      %p123 = scmp.eq.s32.totalorder %s26, 0
      %p124 = por %p122, %p123
      %p125 = scmp.ne.s32.totalorder %s113, %s114
      %p126 = scmp.eq.s32.totalorder %s27, 3
      %p127 = por %p125, %p126
      %p129 = scmp.ne.s32.totalorder %s114, %s128
      %p130 = scmp.eq.s32.totalorder %s27, 0
      %p131 = por %p129, %p130
      %s133 = sadd.s32 %s132, 1
      %p136 = scmp.eq.s32.totalorder %s21, 3
      %p137 = scmp.ne.s32.totalorder %s132, %s134
      %p138 = scmp.eq.s32.totalorder %s21, 0
      %p139 = por %p137, %p138
      %p140 = scmp.ne.s32.totalorder %s132, %s134
      %p141 = scmp.eq.s32.totalorder %s26, 3
      %p142 = por %p140, %p141
      %p143 = scmp.ne.s32.totalorder %s134, %s135
      %p144 = scmp.eq.s32.totalorder %s26, 0
      %p145 = por %p143, %p144
      %p146 = scmp.ne.s32.totalorder %s134, %s135
      %p147 = scmp.eq.s32.totalorder %s27, 3
      %p148 = por %p146, %p147
      %p150 = scmp.ne.s32.totalorder %s135, %s149
      %p151 = scmp.eq.s32.totalorder %s27, 0
      %p152 = por %p150, %p151
      %s154 = sadd.s32 %s153, 1
      %p157 = scmp.eq.s32.totalorder %s21, 3
      %p158 = scmp.ne.s32.totalorder %s153, %s155
      %p159 = scmp.eq.s32.totalorder %s21, 0
      %p160 = por %p158, %p159
      %p161 = scmp.ne.s32.totalorder %s153, %s155
      %p162 = scmp.eq.s32.totalorder %s26, 3
      %p163 = por %p161, %p162
      %p164 = scmp.ne.s32.totalorder %s155, %s156
      %p165 = scmp.eq.s32.totalorder %s26, 0
      %p166 = por %p164, %p165
      %p167 = scmp.ne.s32.totalorder %s155, %s156
      %p168 = scmp.eq.s32.totalorder %s27, 3
      %p169 = por %p167, %p168
      %p171 = scmp.ne.s32.totalorder %s156, %s170
      %p172 = scmp.eq.s32.totalorder %s27, 0
      %p173 = por %p171, %p172
      %s174 = ssub.s32 %s28, %s40
      %s175 = ssub.s32 %s29, %s36
      %s176 = sor.u32 %s174, %s175
      %p177 = scmp.eq.s32.totalorder %s176, 0
      %s179 = sadd.s32 %s178, 1
      %s180 = scalar_select %p177, %s178, %s179
      %p183 = pneg %p177
      %p184 = scmp.eq.s32.totalorder %s21, 3
      %p185 = por %p183, %p184
      %p186 = scmp.ne.s32.totalorder %s178, %s181
      %p187 = scmp.eq.s32.totalorder %s21, 0
      %p188 = por %p186, %p187
      %p189 = scmp.ne.s32.totalorder %s178, %s181
      %p190 = scmp.eq.s32.totalorder %s26, 3
      %p191 = por %p189, %p190
      %p192 = scmp.ne.s32.totalorder %s181, %s182
      %p193 = scmp.eq.s32.totalorder %s26, 0
      %p194 = por %p192, %p193
      %p195 = scmp.ne.s32.totalorder %s181, %s182
      %p196 = scmp.eq.s32.totalorder %s27, 3
      %p197 = por %p195, %p196
      %p199 = scmp.ne.s32.totalorder %s182, %s198
      %p200 = scmp.eq.s32.totalorder %s27, 0
      %p201 = por %p199, %p200
      %p202 = scmp.le.s32.totalorder 1, %s21
      %p203 = scmp.lt.s32.totalorder %s21, 5
      %p204 = pnand %p202, %p203
      %p205 = pneg %p204
      // Predicated region
      $region9: #{fsmd_forward.1} parent=5 // pred_check
        _
      $region10: #{fsmd_forward.1} parent=5 // pred_check_branch
        %207 = sbr.rel (%p204) target = $region12
      $region11: #{fsmd_forward.1} parent=5 // pred_region
        %s208 = ssub.s32 %s21, 1
        // Predicated region
        $region13: #{fsmd_forward.1} parent=11 // pred_check
          %p209 = pneg %p82
        $region14: #{fsmd_forward.1} parent=11 // pred_check_branch
          %211 = sbr.rel (%p209) target = $region16
        $region15: #{fsmd_forward.1} parent=11 // pred_region
          %s213 = ssub.s32 32, 32
          %214 = vsyncadd [#allocation6], %s213
          %s216 = sshll.u32 [#allocation5], 4
          %s217 = int_to_ptr.vmem [resolvable:$true] %s216
          %219 = dma.hbm_to_vmem [thread:$0]  %s1, 32, %s217, [#allocation6]
        $region16: #{fsmd_forward.1} parent=11 // pred_fallthru
          _
        // Predicated region
        $region17: #{fsmd_forward.1} parent=11 // pred_check
          %p220 = pneg %p103
        $region18: #{fsmd_forward.1} parent=11 // pred_check_branch
          %222 = sbr.rel (%p220) target = $region20
        $region19: #{fsmd_forward.1} parent=11 // pred_region
          %s224 = ssub.s32 128, 128
          %225 = vsyncadd [#allocation6], %s224
          %s226 = sshll.u32 [#allocation7], 4
          %s227 = int_to_ptr.vmem [resolvable:$true] %s226
          %232 = dma.hbm_to_vmem [thread:$0]  %s2, 128, %s227, [#allocation6], 64, 64, 4
        $region20: #{fsmd_forward.1} parent=11 // pred_fallthru
          _
        // Predicated region
        $region21: #{fsmd_forward.1} parent=11 // pred_check
          %p233 = pneg %p124
        $region22: #{fsmd_forward.1} parent=11 // pred_check_branch
          %235 = sbr.rel (%p233) target = $region24
        $region23: #{fsmd_forward.1} parent=11 // pred_region
          %s237 = ssub.s32 256, 256
          %238 = vsyncadd [#allocation9], %s237
          %s239 = sshll.u32 [#allocation8], 4
          %s240 = int_to_ptr.vmem [resolvable:$true] %s239
          %245 = dma.hbm_to_vmem [thread:$0]  %s3, 256, %s240, [#allocation9], 128, 128, 8
        $region24: #{fsmd_forward.1} parent=11 // pred_fallthru
          _
        // Predicated region
        $region25: #{fsmd_forward.1} parent=11 // pred_check
          %p246 = pneg %p145
        $region26: #{fsmd_forward.1} parent=11 // pred_check_branch
          %248 = sbr.rel (%p246) target = $region28
        $region27: #{fsmd_forward.1} parent=11 // pred_region
          %s250 = ssub.s32 2048, 2048
          %251 = vsyncadd [#allocation9], %s250
          %s252 = sshll.u32 [#allocation10], 4
          %s253 = int_to_ptr.vmem [resolvable:$true] %s252
          %258 = dma.hbm_to_vmem [thread:$0]  %s4, 2048, %s253, [#allocation9], 64, 64, 4
        $region28: #{fsmd_forward.1} parent=11 // pred_fallthru
          _
        // Predicated region
        $region29: #{fsmd_forward.1} parent=11 // pred_check
          %p259 = pneg %p166
        $region30: #{fsmd_forward.1} parent=11 // pred_check_branch
          %261 = sbr.rel (%p259) target = $region32
        $region31: #{fsmd_forward.1} parent=11 // pred_region
          %s263 = ssub.s32 256, 256
          %264 = vsyncadd [#allocation12], %s263
          %s265 = sshll.u32 [#allocation11], 4
          %s266 = int_to_ptr.vmem [resolvable:$true] %s265
          %271 = dma.hbm_to_vmem [thread:$0]  %s5, 256, %s266, [#allocation12], 128, 128, 8
        $region32: #{fsmd_forward.1} parent=11 // pred_fallthru
          _
      $region12: #{fsmd_forward.1} parent=5 // pred_fallthru
        _
      %p272 = scmp.lt.s32.totalorder %s21, 4
      // Predicated region
      $region33: #{fsmd_forward.1} parent=5 // pred_check
        %p273 = pneg %p272
      $region34: #{fsmd_forward.1} parent=5 // pred_check_branch
        %275 = sbr.rel (%p273) target = $region36
      $region35: #{fsmd_forward.1} parent=5 // pred_region
        // Predicated region
        $region37: #{fsmd_forward.1} parent=35 // pred_check
          %p276 = pneg %p55
        $region38: #{fsmd_forward.1} parent=35 // pred_check_branch
          %278 = sbr.rel (%p276) target = $region40
        $region39: #{fsmd_forward.1} parent=35 // pred_region
          %s279 = sand.u32 %s45, 1
          %s280 = scalar_lea.sflag [#allocation3], %s279
          %s281 = sand.u32 %s45, 1
          %s282 = smul.addr %s281, 40
          %s283 = scalar_lea.vmem [#allocation2], %s282
          %s285 = ssub.s32 640, 640
          %286 = vsyncadd %s280, %s285
          %s287 = smul.addr %s29, 10
          %s288 = smul.addr %s28, 20
          %s289 = sadd.s32 %s287, %s288
          %s290 = smul.addr %s289, 64
          %s291 = scalar_lea.hbm %s0, %s290
          %s292 = sshll.u32 %s283, 4
          %s293 = int_to_ptr.vmem [resolvable:$true] %s292
          %298 = dma.hbm_to_vmem [thread:$0]  %s291, 640, %s293, %s280, 128, 128, 8
        $region40: #{fsmd_forward.1} parent=35 // pred_fallthru
          _
      $region36: #{fsmd_forward.1} parent=5 // pred_fallthru
        _
      %p299 = scmp.le.s32.totalorder 1, %s21
      %p300 = scmp.lt.s32.totalorder %s21, 5
      %p301 = pnand %p299, %p300
      %p302 = pneg %p301
      // Predicated region
      $region41: #{fsmd_forward.1} parent=5 // pred_check
        _
      $region42: #{fsmd_forward.1} parent=5 // pred_check_branch
        %304 = sbr.rel (%p301) target = $region44
      $region43: #{fsmd_forward.1} parent=5 // pred_region
        %s305 = ssub.s32 %s21, 1
        %s306 = sand.u32 %s48, 1
        %s307 = scalar_lea.sflag [#allocation3], %s306
        %s308 = sand.u32 %s48, 1
        %s309 = smul.addr %s308, 40
        %s310 = scalar_lea.vmem [#allocation2], %s309
        // Predicated region
        $region45: #{fsmd_forward.1} parent=43 // pred_check
          %p311 = pneg %p61
        $region46: #{fsmd_forward.1} parent=43 // pred_check_branch
          %313 = sbr.rel (%p311) target = $region48
        $region47: #{fsmd_forward.1} parent=43 // pred_region
          %314 = dma.done %s307, 640
        $region48: #{fsmd_forward.1} parent=43 // pred_fallthru
          _
        // Predicated region
        $region49: #{fsmd_forward.1} parent=43 // pred_check
          %p315 = pneg %p82
        $region50: #{fsmd_forward.1} parent=43 // pred_check_branch
          %317 = sbr.rel (%p315) target = $region52
        $region51: #{fsmd_forward.1} parent=43 // pred_region
          %318 = dma.done [#allocation6], 32
        $region52: #{fsmd_forward.1} parent=43 // pred_fallthru
          _
        // Predicated region
        $region53: #{fsmd_forward.1} parent=43 // pred_check
          %p319 = pneg %p103
        $region54: #{fsmd_forward.1} parent=43 // pred_check_branch
          %321 = sbr.rel (%p319) target = $region56
        $region55: #{fsmd_forward.1} parent=43 // pred_region
          %322 = dma.done [#allocation6], 128
        $region56: #{fsmd_forward.1} parent=43 // pred_fallthru
          _
        // Predicated region
        $region57: #{fsmd_forward.1} parent=43 // pred_check
          %p323 = pneg %p124
        $region58: #{fsmd_forward.1} parent=43 // pred_check_branch
          %325 = sbr.rel (%p323) target = $region60
        $region59: #{fsmd_forward.1} parent=43 // pred_region
          %326 = dma.done [#allocation9], 256
        $region60: #{fsmd_forward.1} parent=43 // pred_fallthru
          _
        // Predicated region
        $region61: #{fsmd_forward.1} parent=43 // pred_check
          %p327 = pneg %p145
        $region62: #{fsmd_forward.1} parent=43 // pred_check_branch
          %329 = sbr.rel (%p327) target = $region64
        $region63: #{fsmd_forward.1} parent=43 // pred_region
          %330 = dma.done [#allocation9], 2048
        $region64: #{fsmd_forward.1} parent=43 // pred_fallthru
          _
        // Predicated region
        $region65: #{fsmd_forward.1} parent=43 // pred_check
          %p331 = pneg %p166
        $region66: #{fsmd_forward.1} parent=43 // pred_check_branch
          %333 = sbr.rel (%p331) target = $region68
        $region67: #{fsmd_forward.1} parent=43 // pred_region
          %334 = dma.done [#allocation12], 256
        $region68: #{fsmd_forward.1} parent=43 // pred_fallthru
          _
        %s335 = sand.u32 %s48, 1
        %s336 = scalar_lea.sflag [#allocation3], %s335
        %s337 = sand.u32 %s48, 1
        %s338 = smul.addr %s337, 40
        %s339 = scalar_lea.vmem [#allocation2], %s338
        %p340 = pneg %p61
        %p341 = pneg %p58
        %p342 = pneg %p82
        %p343 = pneg %p79
        %p344 = pneg %p103
        %p345 = pneg %p100
        %p346 = pneg %p124
        %p347 = pneg %p121
        %p348 = pneg %p145
        %p349 = pneg %p142
        %p350 = pneg %p166
        %p351 = pneg %p163
        %p352 = pneg %p194
        %p353 = pneg %p191
        %s354 = sand.u32 %s181, 1
        %s355 = scalar_lea.sflag [#allocation4], %s354
        %s356 = sand.u32 %s181, 1
        %s357 = smul.addr %s356, 32
        %s358 = scalar_lea.vmem [#allocation13], %s357
        %v360 = vld [vmem:[%s310] sm:$0xff]
        %v361 = vld [vmem:[%s310 + $0x8] sm:$0xff]
        %v362 = vld [vmem:[%s310 + $0x10] sm:$0xff]
        %v363 = vld [vmem:[%s310 + $0x18] sm:$0xff]
        %v364 = vld [vmem:[%s310 + $0x20] sm:$0xff]
        %v365 = vld [vmem:[#allocation7] sm:$0xf]
        %v366 = vld [vmem:[#allocation7 + $0x4] sm:$0xf]
        %v367 = vld [vmem:[#allocation8] sm:$0xff]
        %v368 = vld [vmem:[#allocation8 + $0x8] sm:$0xff]
        %370 = vset.pattern.permute.xlu0 0
        %371 = vperm.xlu0 %370, %v367
        %v372 = vpop.permute.xlu0 %371
        %375 = vset.pattern.permute.xlu0 0
        %376 = vperm.xlu0 %375, %v368
        %v377 = vpop.permute.xlu0 %376
        %v381 = vunpack.c.l.b16 %v365
        %v382 = vunpack.c.l.b16 %v366
        %v383 = vpack.c.b16 %v382, %v381
        %v389 = vunpack.c.l.b16 %v360
        %v390 = vunpack.c.h.b16 %v360
        %v391 = vunpack.c.l.b16 %v361
        %v392 = vunpack.c.h.b16 %v361
        %v393 = vunpack.c.l.b16 %v362
        %v394 = vunpack.c.h.b16 %v362
        %v395 = vunpack.c.l.b16 %v363
        %v396 = vunpack.c.h.b16 %v363
        %v397 = vunpack.c.l.b16 %v364
        %v398 = vunpack.c.h.b16 %v364
        %v399 = vpack.c.b16 %v391, %v389
        %v400 = vpack.c.b16 %v392, %v390
        %v401 = vpack.c.b16 %v395, %v393
        %v402 = vpack.c.b16 %v396, %v394
        %v403 = vpack.c.b16 %v397, %v397
        %v404 = vpack.c.b16 %v398, %v398
        %vm409 = vcmask 326656
        %v411 = vsel %vm409, %v383, 0
        %vm413 = vcmask 1043456
        %v415 = vsel %vm413, %v403, 0
        %v418 = vsel %vm413, %v404, 0
        %420 = vmatprep.subr.bf16.mxu0 %v400
        %421 = vmatpush1.bf16.msra.mxu0 %v399
        %422 = vmatprep.subr.bf16.mxu0 %v402
        %423 = vmatpush1.bf16.msra.mxu0 %v401
        %424 = vmatprep.subr.bf16.mxu0 %v418
        %425 = vmatpush1.bf16.msra.mxu0 %v415
        %426 = vmatprep.subr.bf16.mxu0 0
        %427 = vmatpush1.bf16.msra.mxu0 0
        %428 = vmatprep.subr.bf16.mxu0 0
        %429 = vmatpush1.bf16.msra.mxu0 0
        %430 = vmatprep.subr.bf16.mxu0 0
        %431 = vmatpush1.bf16.msra.mxu0 0
        %432 = vmatprep.subr.bf16.mxu0 0
        %433 = vmatpush1.bf16.msra.mxu0 0
        %434 = vmatprep.subr.bf16.mxu0 0
        %435 = vmatpush1.bf16.msra.mxu0 0
        %436 = vmatprep.subr.bf16.mxu0 0
        %437 = vmatpush1.bf16.msra.mxu0 0
        %438 = vmatprep.subr.bf16.mxu0 0
        %439 = vmatpush1.bf16.msra.mxu0 0
        %440 = vmatprep.subr.bf16.mxu0 0
        %441 = vmatpush1.bf16.msra.mxu0 0
        %442 = vmatprep.subr.bf16.mxu0 0
        %443 = vmatpush1.bf16.msra.mxu0 0
        %444 = vmatprep.subr.bf16.mxu0 0
        %445 = vmatpush1.bf16.msra.mxu0 0
        %446 = vmatprep.subr.bf16.mxu0 0
        %447 = vmatpush1.bf16.msra.mxu0 0
        %448 = vmatprep.subr.bf16.mxu0 0
        %449 = vmatpush1.bf16.msra.mxu0 0
        %450 = vmatprep.subr.bf16.mxu0 0
        %451 = vmatpush1.bf16.msra.mxu0 0
        %452 = vmatprep.mubr.bf16.mxu0 0
        %453 = vmatmul.mubr.bf16.gmra.mrb[0].mxu0 %v411
        %v454 = vpop.f32.mrb[0].mxu0
        %v455 = vadd.f32 %v372, %v454
        %v456 = vpop.f32.mrb[0].mxu0
        %v457 = vadd.f32 %v372, %v456
        %v458 = vpop.f32.mrb[0].mxu0
        %v459 = vadd.f32 %v377, %v458
        %v460 = vpop.f32.mrb[0].mxu0
        %v461 = vadd.f32 %v377, %v460
        %462 = vdwg.mxu0
        %v463 = vmul.f32 %v455, %v455
        %v464 = vmul.f32 %v457, %v457
        %v465 = vmul.f32 %v459, %v459
        %v466 = vmul.f32 %v461, %v461
        %v467 = vmul.f32 %v463, %v455
        %v468 = vmul.f32 %v464, %v457
        %v469 = vmul.f32 %v465, %v459
        %v470 = vmul.f32 %v466, %v461
        %v471 = vmul.f32 %v467, 0.044715
        %v472 = vmul.f32 %v468, 0.044715
        %v473 = vmul.f32 %v469, 0.044715
        %v474 = vmul.f32 %v470, 0.044715
        %v475 = vadd.f32 %v455, %v471
        %v476 = vadd.f32 %v457, %v472
        %v477 = vadd.f32 %v459, %v473
        %v478 = vadd.f32 %v461, %v474
        %v479 = vmul.f32 %v475, 0.7978846
        %v480 = vmul.f32 %v476, 0.7978846
        %v481 = vmul.f32 %v477, 0.7978846
        %v482 = vmul.f32 %v478, 0.7978846
        %v483 = vmul.f32 %v455, 0.5
        %v484 = vmul.f32 %v457, 0.5
        %v485 = vmul.f32 %v459, 0.5
        %v486 = vmul.f32 %v461, 0.5
        %v487 = vtanh.pop %v479
        %v488 = vtanh.pop %v480
        %v489 = vtanh.pop %v481
        %v490 = vtanh.pop %v482
        %v491 = vadd.f32 %v487, 1.0
        %v492 = vadd.f32 %v488, 1.0
        %v493 = vadd.f32 %v489, 1.0
        %v494 = vadd.f32 %v490, 1.0
        %v495 = vmul.f32 %v483, %v491
        %v496 = vmul.f32 %v484, %v492
        %v497 = vmul.f32 %v485, %v493
        %v498 = vmul.f32 %v486, %v494
        %v499 = vlaneseq
        %v500 = vand.u32 %v499, 127
        %v501 = vadd.s32 %v500, 128
        %v502 = vsub.s32 %v500, 1
        %v503 = vsub.s32 %v501, 1
        %vm504 = vcmp.ge.s32.totalorder %v500, 1
        %vm505 = vcmp.ge.s32.totalorder %v501, 1
        %vm506 = vcmp.le.s32.totalorder %v500, 160
        %vm507 = vcmp.le.s32.totalorder %v501, 160
        %vm508 = vmand %vm504, %vm506
        %vm509 = vmand %vm505, %vm507
        %vm510 = vcmp.ge.s32.totalorder %v502, 16
        %vm511 = vcmp.ge.s32.totalorder %v503, 16
        %p512 = scmp.gt.s32.totalorder %s31, 0
        %s513 = scalar_select %p512, 1, 0
        %v514 = vstv %s513
        %vm515 = vcmp.eq.s32.totalorder %v514, 1
        %vm516 = vmor %vm510, %vm515
        %vm517 = vmor %vm511, %vm515
        %vm518 = vcmp.lt.s32.totalorder %v502, 144
        %vm519 = vcmp.lt.s32.totalorder %v503, 144
        %p520 = scmp.lt.s32.totalorder %s31, 1
        %s521 = scalar_select %p520, 1, 0
        %v522 = vstv %s521
        %vm523 = vcmp.eq.s32.totalorder %v522, 1
        %vm524 = vmor %vm518, %vm523
        %vm525 = vmor %vm519, %vm523
        %vm526 = vmand %vm516, %vm524
        %vm527 = vmand %vm517, %vm525
        %vm528 = vmand %vm508, %vm526
        %vm529 = vmand %vm509, %vm527
        %v530 = vsel %vm528, 1, 0
        %v531 = vsel %vm529, 1, 0
        %vm532 = vcmp.eq.s32.totalorder %v530, 1
        %vm533 = vcmp.eq.s32.totalorder %v531, 1
        %v534 = vsel %vm532, %v495, 0.0
        %v535 = vsel %vm533, %v496, 0.0
        %v536 = vsel %vm532, %v497, 0.0
        %v537 = vsel %vm533, %v498, 0.0
        %v538 = vld [vmem:[#allocation10] sm:$0xf]
        %v539 = vld [vmem:[#allocation10 + $0x4] sm:$0xf]
        %v540 = vld [vmem:[#allocation10 + $0x8] sm:$0xf]
        %v541 = vld [vmem:[#allocation10 + $0xc] sm:$0xf]
        %v542 = vld [vmem:[#allocation10 + $0x10] sm:$0xf]
        %v543 = vld [vmem:[#allocation10 + $0x14] sm:$0xf]
        %v544 = vld [vmem:[#allocation10 + $0x18] sm:$0xf]
        %v545 = vld [vmem:[#allocation10 + $0x1c] sm:$0xf]
        %v546 = vld [vmem:[#allocation10 + $0x20] sm:$0xf]
        %v547 = vld [vmem:[#allocation10 + $0x24] sm:$0xf]
        %v548 = vld [vmem:[#allocation10 + $0x28] sm:$0xf]
        %v549 = vld [vmem:[#allocation10 + $0x2c] sm:$0xf]
        %v550 = vld [vmem:[#allocation10 + $0x30] sm:$0xf]
        %v551 = vld [vmem:[#allocation10 + $0x34] sm:$0xf]
        %v552 = vld [vmem:[#allocation10 + $0x38] sm:$0xf]
        %v553 = vld [vmem:[#allocation10 + $0x3c] sm:$0xf]
        %v554 = vld [vmem:[#allocation10 + $0x40] sm:$0xf]
        %v555 = vld [vmem:[#allocation10 + $0x44] sm:$0xf]
        %v556 = vld [vmem:[#allocation10 + $0x48] sm:$0xf]
        %v557 = vld [vmem:[#allocation10 + $0x4c] sm:$0xf]
        %v558 = vld [vmem:[#allocation10 + $0x50] sm:$0xf]
        %v559 = vld [vmem:[#allocation10 + $0x54] sm:$0xf]
        %v560 = vld [vmem:[#allocation10 + $0x58] sm:$0xf]
        %v561 = vld [vmem:[#allocation10 + $0x5c] sm:$0xf]
        %v562 = vld [vmem:[#allocation10 + $0x60] sm:$0xf]
        %v563 = vld [vmem:[#allocation10 + $0x64] sm:$0xf]
        %v564 = vld [vmem:[#allocation10 + $0x68] sm:$0xf]
        %v565 = vld [vmem:[#allocation10 + $0x6c] sm:$0xf]
        %v566 = vld [vmem:[#allocation10 + $0x70] sm:$0xf]
        %v567 = vld [vmem:[#allocation10 + $0x74] sm:$0xf]
        %v568 = vld [vmem:[#allocation10 + $0x78] sm:$0xf]
        %v569 = vld [vmem:[#allocation10 + $0x7c] sm:$0xf]
        %v570 = vpack.c.bf16 %v536, %v534
        %v571 = vpack.c.bf16 %v537, %v535
        %v604 = vunpack.c.l.b16 %v538
        %v605 = vunpack.c.l.b16 %v539
        %v606 = vunpack.c.l.b16 %v540
        %v607 = vunpack.c.l.b16 %v541
        %v608 = vunpack.c.l.b16 %v542
        %v609 = vunpack.c.l.b16 %v543
        %v610 = vunpack.c.l.b16 %v544
        %v611 = vunpack.c.l.b16 %v545
        %v612 = vunpack.c.l.b16 %v546
        %v613 = vunpack.c.l.b16 %v547
        %v614 = vunpack.c.l.b16 %v548
        %v615 = vunpack.c.l.b16 %v549
        %v616 = vunpack.c.l.b16 %v550
        %v617 = vunpack.c.l.b16 %v551
        %v618 = vunpack.c.l.b16 %v552
        %v619 = vunpack.c.l.b16 %v553
        %v620 = vunpack.c.l.b16 %v554
        %v621 = vunpack.c.l.b16 %v555
        %v622 = vunpack.c.l.b16 %v556
        %v623 = vunpack.c.l.b16 %v557
        %v624 = vunpack.c.l.b16 %v558
        %v625 = vunpack.c.l.b16 %v559
        %v626 = vunpack.c.l.b16 %v560
        %v627 = vunpack.c.l.b16 %v561
        %v628 = vunpack.c.l.b16 %v562
        %v629 = vunpack.c.l.b16 %v563
        %v630 = vunpack.c.l.b16 %v564
        %v631 = vunpack.c.l.b16 %v565
        %v632 = vunpack.c.l.b16 %v566
        %v633 = vunpack.c.l.b16 %v567
        %v634 = vunpack.c.l.b16 %v568
        %v635 = vunpack.c.l.b16 %v569
        %v636 = vpack.c.b16 %v605, %v604
        %v637 = vpack.c.b16 %v607, %v606
        %v638 = vpack.c.b16 %v609, %v608
        %v639 = vpack.c.b16 %v611, %v610
        %v640 = vpack.c.b16 %v613, %v612
        %v641 = vpack.c.b16 %v615, %v614
        %v642 = vpack.c.b16 %v617, %v616
        %v643 = vpack.c.b16 %v619, %v618
        %v644 = vpack.c.b16 %v621, %v620
        %v645 = vpack.c.b16 %v623, %v622
        %v646 = vpack.c.b16 %v625, %v624
        %v647 = vpack.c.b16 %v627, %v626
        %v648 = vpack.c.b16 %v629, %v628
        %v649 = vpack.c.b16 %v631, %v630
        %v650 = vpack.c.b16 %v633, %v632
        %v651 = vpack.c.b16 %v635, %v634
        %vm652 = vcmask 130048
        %v654 = vsel %vm652, %v636, 0
        %v657 = vsel %vm652, %v637, 0
        %v660 = vsel %vm652, %v638, 0
        %v663 = vsel %vm652, %v639, 0
        %v666 = vsel %vm652, %v640, 0
        %v669 = vsel %vm652, %v641, 0
        %v672 = vsel %vm652, %v642, 0
        %v675 = vsel %vm652, %v643, 0
        %v678 = vsel %vm652, %v644, 0
        %v681 = vsel %vm652, %v645, 0
        %v684 = vsel %vm652, %v646, 0
        %v687 = vsel %vm652, %v647, 0
        %v690 = vsel %vm652, %v648, 0
        %v693 = vsel %vm652, %v649, 0
        %v696 = vsel %vm652, %v650, 0
        %v699 = vsel %vm652, %v651, 0
        %701 = vmatprep.subr.bf16.mxu0 %v571
        %702 = vmatpush1.bf16.msra.mxu0 %v570
        %703 = vmatprep.subr.bf16.mxu0 0
        %704 = vmatpush1.bf16.msra.mxu0 0
        %705 = vmatprep.subr.bf16.mxu0 0
        %706 = vmatpush1.bf16.msra.mxu0 0
        %707 = vmatprep.subr.bf16.mxu0 0
        %708 = vmatpush1.bf16.msra.mxu0 0
        %709 = vmatprep.subr.bf16.mxu0 0
        %710 = vmatpush1.bf16.msra.mxu0 0
        %711 = vmatprep.subr.bf16.mxu0 0
        %712 = vmatpush1.bf16.msra.mxu0 0
        %713 = vmatprep.subr.bf16.mxu0 0
        %714 = vmatpush1.bf16.msra.mxu0 0
        %715 = vmatprep.subr.bf16.mxu0 0
        %716 = vmatpush1.bf16.msra.mxu0 0
        %717 = vmatprep.subr.bf16.mxu0 0
        %718 = vmatpush1.bf16.msra.mxu0 0
        %719 = vmatprep.subr.bf16.mxu0 0
        %720 = vmatpush1.bf16.msra.mxu0 0
        %721 = vmatprep.subr.bf16.mxu0 0
        %722 = vmatpush1.bf16.msra.mxu0 0
        %723 = vmatprep.subr.bf16.mxu0 0
        %724 = vmatpush1.bf16.msra.mxu0 0
        %725 = vmatprep.subr.bf16.mxu0 0
        %726 = vmatpush1.bf16.msra.mxu0 0
        %727 = vmatprep.subr.bf16.mxu0 0
        %728 = vmatpush1.bf16.msra.mxu0 0
        %729 = vmatprep.subr.bf16.mxu0 0
        %730 = vmatpush1.bf16.msra.mxu0 0
        %731 = vmatprep.subr.bf16.mxu0 0
        %732 = vmatpush1.bf16.msra.mxu0 0
        %733 = vmatprep.mubr.bf16.mxu0 0
        %734 = vmatmul.mubr.bf16.gmra.mrb[0].mxu0 %v654
        %v735 = vpop.f32.mrb[0].mxu0
        %v736 = vadd.f32 0.0, %v735
        %v737 = vpop.f32.mrb[0].mxu0
        %v738 = vpop.f32.mrb[0].mxu0
        %v739 = vadd.f32 0.0, %v738
        %v740 = vpop.f32.mrb[0].mxu0
        %741 = vmatprep.mubr.bf16.mxu0 0
        %742 = vmatmul.mubr.bf16.gmra.mrb[0].mxu0 %v657
        %v743 = vpop.f32.mrb[0].mxu0
        %v744 = vadd.f32 0.0, %v743
        %v745 = vpop.f32.mrb[0].mxu0
        %v746 = vadd.f32 0.0, %v745
        %v747 = vpop.f32.mrb[0].mxu0
        %v748 = vadd.f32 0.0, %v747
        %v749 = vpop.f32.mrb[0].mxu0
        %v750 = vadd.f32 0.0, %v749
        %751 = vmatprep.mubr.bf16.mxu0 0
        %752 = vmatmul.mubr.bf16.gmra.mrb[0].mxu0 %v660
        %v753 = vpop.f32.mrb[0].mxu0
        %v754 = vadd.f32 0.0, %v753
        %v755 = vpop.f32.mrb[0].mxu0
        %v756 = vadd.f32 0.0, %v755
        %v757 = vpop.f32.mrb[0].mxu0
        %v758 = vadd.f32 0.0, %v757
        %v759 = vpop.f32.mrb[0].mxu0
        %v760 = vadd.f32 0.0, %v759
        %761 = vmatprep.mubr.bf16.mxu0 0
        %762 = vmatmul.mubr.bf16.gmra.mrb[0].mxu0 %v663
        %v763 = vpop.f32.mrb[0].mxu0
        %v764 = vadd.f32 0.0, %v763
        %v765 = vpop.f32.mrb[0].mxu0
        %v766 = vadd.f32 0.0, %v765
        %v767 = vpop.f32.mrb[0].mxu0
        %v768 = vadd.f32 0.0, %v767
        %v769 = vpop.f32.mrb[0].mxu0
        %v770 = vadd.f32 0.0, %v769
        %771 = vmatprep.mubr.bf16.mxu0 0
        %772 = vmatmul.mubr.bf16.gmra.mrb[0].mxu0 %v666
        %v773 = vpop.f32.mrb[0].mxu0
        %v774 = vadd.f32 0.0, %v773
        %v775 = vpop.f32.mrb[0].mxu0
        %v776 = vadd.f32 0.0, %v775
        %v777 = vpop.f32.mrb[0].mxu0
        %v778 = vadd.f32 0.0, %v777
        %v779 = vpop.f32.mrb[0].mxu0
        %v780 = vadd.f32 0.0, %v779
        %781 = vmatprep.mubr.bf16.mxu0 0
        %782 = vmatmul.mubr.bf16.gmra.mrb[0].mxu0 %v669
        %v783 = vpop.f32.mrb[0].mxu0
        %v784 = vadd.f32 0.0, %v783
        %v785 = vpop.f32.mrb[0].mxu0
        %v786 = vadd.f32 0.0, %v785
        %v787 = vpop.f32.mrb[0].mxu0
        %v788 = vadd.f32 0.0, %v787
        %v789 = vpop.f32.mrb[0].mxu0
        %v790 = vadd.f32 0.0, %v789
        %791 = vmatprep.mubr.bf16.mxu0 0
        %792 = vmatmul.mubr.bf16.gmra.mrb[0].mxu0 %v672
        %v793 = vpop.f32.mrb[0].mxu0
        %v794 = vadd.f32 0.0, %v793
        %v795 = vpop.f32.mrb[0].mxu0
        %v796 = vadd.f32 0.0, %v795
        %v797 = vpop.f32.mrb[0].mxu0
        %v798 = vadd.f32 0.0, %v797
        %v799 = vpop.f32.mrb[0].mxu0
        %v800 = vadd.f32 0.0, %v799
        %801 = vmatprep.mubr.bf16.mxu0 0
        %802 = vmatmul.mubr.bf16.gmra.mrb[0].mxu0 %v675
        %v803 = vpop.f32.mrb[0].mxu0
        %v804 = vadd.f32 0.0, %v803
        %v805 = vpop.f32.mrb[0].mxu0
        %v806 = vadd.f32 0.0, %v805
        %v807 = vpop.f32.mrb[0].mxu0
        %v808 = vadd.f32 0.0, %v807
        %v809 = vpop.f32.mrb[0].mxu0
        %v810 = vadd.f32 0.0, %v809
        %811 = vmatprep.mubr.bf16.mxu0 0
        %812 = vmatmul.mubr.bf16.gmra.mrb[0].mxu0 %v678
        %v813 = vpop.f32.mrb[0].mxu0
        %v814 = vadd.f32 0.0, %v813
        %v815 = vpop.f32.mrb[0].mxu0
        %v816 = vadd.f32 0.0, %v815
        %v817 = vpop.f32.mrb[0].mxu0
        %v818 = vadd.f32 0.0, %v817
        %v819 = vpop.f32.mrb[0].mxu0
        %v820 = vadd.f32 0.0, %v819
        %821 = vmatprep.mubr.bf16.mxu0 0
        %822 = vmatmul.mubr.bf16.gmra.mrb[0].mxu0 %v681
        %v823 = vpop.f32.mrb[0].mxu0
        %v824 = vadd.f32 0.0, %v823
        %v825 = vpop.f32.mrb[0].mxu0
        %v826 = vadd.f32 0.0, %v825
        %v827 = vpop.f32.mrb[0].mxu0
        %v828 = vadd.f32 0.0, %v827
        %v829 = vpop.f32.mrb[0].mxu0
        %v830 = vadd.f32 0.0, %v829
        %831 = vmatprep.mubr.bf16.mxu0 0
        %832 = vmatmul.mubr.bf16.gmra.mrb[0].mxu0 %v684
        %v833 = vpop.f32.mrb[0].mxu0
        %v834 = vadd.f32 0.0, %v833
        %v835 = vpop.f32.mrb[0].mxu0
        %v836 = vadd.f32 0.0, %v835
        %v837 = vpop.f32.mrb[0].mxu0
        %v838 = vadd.f32 0.0, %v837
        %v839 = vpop.f32.mrb[0].mxu0
        %v840 = vadd.f32 0.0, %v839
        %841 = vmatprep.mubr.bf16.mxu0 0
        %842 = vmatmul.mubr.bf16.gmra.mrb[0].mxu0 %v687
        %v843 = vpop.f32.mrb[0].mxu0
        %v844 = vadd.f32 0.0, %v843
        %v845 = vpop.f32.mrb[0].mxu0
        %v846 = vadd.f32 0.0, %v845
        %v847 = vpop.f32.mrb[0].mxu0
        %v848 = vadd.f32 0.0, %v847
        %v849 = vpop.f32.mrb[0].mxu0
        %v850 = vadd.f32 0.0, %v849
        %851 = vmatprep.mubr.bf16.mxu0 0
        %852 = vmatmul.mubr.bf16.gmra.mrb[0].mxu0 %v690
        %v853 = vpop.f32.mrb[0].mxu0
        %v854 = vadd.f32 0.0, %v853
        %v855 = vpop.f32.mrb[0].mxu0
        %v856 = vadd.f32 0.0, %v855
        %v857 = vpop.f32.mrb[0].mxu0
        %v858 = vadd.f32 0.0, %v857
        %v859 = vpop.f32.mrb[0].mxu0
        %v860 = vadd.f32 0.0, %v859
        %861 = vmatprep.mubr.bf16.mxu0 0
        %862 = vmatmul.mubr.bf16.gmra.mrb[0].mxu0 %v693
        %v863 = vpop.f32.mrb[0].mxu0
        %v864 = vadd.f32 0.0, %v863
        %v865 = vpop.f32.mrb[0].mxu0
        %v866 = vadd.f32 0.0, %v865
        %v867 = vpop.f32.mrb[0].mxu0
        %v868 = vadd.f32 0.0, %v867
        %v869 = vpop.f32.mrb[0].mxu0
        %v870 = vadd.f32 0.0, %v869
        %871 = vmatprep.mubr.bf16.mxu0 0
        %872 = vmatmul.mubr.bf16.gmra.mrb[0].mxu0 %v696
        %v873 = vpop.f32.mrb[0].mxu0
        %v874 = vadd.f32 0.0, %v873
        %v875 = vpop.f32.mrb[0].mxu0
        %v876 = vadd.f32 0.0, %v875
        %v877 = vpop.f32.mrb[0].mxu0
        %v878 = vadd.f32 0.0, %v877
        %v879 = vpop.f32.mrb[0].mxu0
        %v880 = vadd.f32 0.0, %v879
        %881 = vmatprep.mubr.bf16.mxu0 0
        %882 = vmatmul.mubr.bf16.gmra.mrb[0].mxu0 %v699
        %v883 = vpop.f32.mrb[0].mxu0
        %v884 = vadd.f32 0.0, %v883
        %v885 = vpop.f32.mrb[0].mxu0
        %v886 = vadd.f32 0.0, %v885
        %v887 = vpop.f32.mrb[0].mxu0
        %v888 = vadd.f32 0.0, %v887
        %v889 = vpop.f32.mrb[0].mxu0
        %v890 = vadd.f32 0.0, %v889
        %891 = vdwg.mxu0
        %v892 = vld [vmem:[#allocation5] sm:$0x1]
        %v893 = vld [vmem:[#allocation5 + $0x1] sm:$0x1]
        %v894 = vld [vmem:[#allocation11] sm:$0xff]
        %v895 = vld [vmem:[#allocation11 + $0x8] sm:$0xff]
        %v896 = vlaneseq
        %v897 = vshrl.u32 %v896, 7
        %v898 = vsub.s32 0, %v897
        %v899 = vrot.slane %v892, %v898
        %v900 = vmul.f32 %v736, %v899
        %v901 = vmul.f32 %v739, %v899
        %906 = vrot.lane.b32.xlu0 %v744, 127
        %v907 = vpop.permute.xlu0 %906
        %908 = vrot.lane.b32.xlu0 %v746, 127
        %v909 = vpop.permute.xlu0 %908
        %910 = vrot.lane.b32.xlu0 %v748, 127
        %v911 = vpop.permute.xlu0 %910
        %912 = vrot.lane.b32.xlu0 %v750, 127
        %v913 = vpop.permute.xlu0 %912
        %vm914 = vcmask 1039360
        %v915 = vsel %vm914, %v907, %v909
        %v916 = vsel %vm914, %v911, %v913
        %v919 = vadd.f32 %v900, %v915
        %v920 = vadd.f32 %v901, %v916
        %922 = vrot.lane.b32.xlu0 %v899, 16
        %v923 = vpop.permute.xlu0 %922
        %v925 = vmul.f32 %v754, %v923
        %v926 = vmul.f32 %v756, %v923
        %v927 = vmul.f32 %v758, %v923
        %v928 = vmul.f32 %v760, %v923
        %933 = vrot.lane.b32.xlu0 %v925, 112
        %v934 = vpop.permute.xlu0 %933
        %935 = vrot.lane.b32.xlu0 %v926, 112
        %v936 = vpop.permute.xlu0 %935
        %937 = vrot.lane.b32.xlu0 %v927, 112
        %v938 = vpop.permute.xlu0 %937
        %939 = vrot.lane.b32.xlu0 %v928, 112
        %v940 = vpop.permute.xlu0 %939
        %vm941 = vcmask 916480
        %v942 = vsel %vm941, %v934, %v936
        %v943 = vsel %vm941, %v938, %v940
        %v946 = vadd.f32 %v919, %v942
        %v947 = vadd.f32 %v920, %v943
        %952 = vrot.lane.b32.xlu0 %v764, 111
        %v953 = vpop.permute.xlu0 %952
        %954 = vrot.lane.b32.xlu0 %v766, 111
        %v955 = vpop.permute.xlu0 %954
        %956 = vrot.lane.b32.xlu0 %v768, 111
        %v957 = vpop.permute.xlu0 %956
        %958 = vrot.lane.b32.xlu0 %v770, 111
        %v959 = vpop.permute.xlu0 %958
        %vm960 = vcmask 908288
        %v961 = vsel %vm960, %v953, %v955
        %v962 = vsel %vm960, %v957, %v959
        %v965 = vadd.f32 %v946, %v961
        %v966 = vadd.f32 %v947, %v962
        %968 = vset.pattern.permute.xlu0 0
        %969 = vperm.xlu0 %968, %v894
        %v970 = vpop.permute.xlu0 %969
        %973 = vset.pattern.permute.xlu0 0
        %974 = vperm.xlu0 %973, %v895
        %v975 = vpop.permute.xlu0 %974
        %v977 = vadd.f32 %v965, %v970
        %v978 = vadd.f32 %v966, %v975
        %v979 = vpack.c.bf16 %v978, %v977
        %v981 = vunpack.c.l.b16 %v979
        %v982 = vunpack.c.h.b16 %v979
        %v983 = vpack.c.b16 %v981, %v981
        %v984 = vpack.c.b16 %v982, %v982
        %987 = vst [vmem:[%s358] sm:$0xf] %v983
        %988 = vst [vmem:[%s358 + $0x4] sm:$0xf] %v984
        %v989 = vlaneseq
        %v990 = vshrl.u32 %v989, 7
        %v991 = vsub.s32 0, %v990
        %v992 = vrot.slane %v893, %v991
        %994 = vrot.lane.b32.xlu0 %v992, 2
        %v995 = vpop.permute.xlu0 %994
        %v997 = vmul.f32 %v784, %v995
        %v998 = vmul.f32 %v786, %v995
        %v999 = vmul.f32 %v788, %v995
        %v1000 = vmul.f32 %v790, %v995
        %1005 = vrot.lane.b32.xlu0 %v997, 127
        %v1006 = vpop.permute.xlu0 %1005
        %1007 = vrot.lane.b32.xlu0 %v998, 127
        %v1008 = vpop.permute.xlu0 %1007
        %1009 = vrot.lane.b32.xlu0 %v999, 127
        %v1010 = vpop.permute.xlu0 %1009
        %1011 = vrot.lane.b32.xlu0 %v1000, 127
        %v1012 = vpop.permute.xlu0 %1011
        %v1013 = vsel %vm914, %v1006, %v1008
        %v1014 = vsel %vm914, %v1010, %v1012
        %v1019 = vadd.f32 %v774, %v1013
        %v1020 = vadd.f32 %v776, %v1008
        %v1021 = vadd.f32 %v778, %v1014
        %v1022 = vadd.f32 %v780, %v1012
        %1027 = vrot.lane.b32.xlu0 %v794, 112
        %v1028 = vpop.permute.xlu0 %1027
        %1029 = vrot.lane.b32.xlu0 %v796, 112
        %v1030 = vpop.permute.xlu0 %1029
        %1031 = vrot.lane.b32.xlu0 %v798, 112
        %v1032 = vpop.permute.xlu0 %1031
        %1033 = vrot.lane.b32.xlu0 %v800, 112
        %v1034 = vpop.permute.xlu0 %1033
        %v1035 = vsel %vm941, %v1028, %v1030
        %v1036 = vsel %vm941, %v1032, %v1034
        %v1041 = vadd.f32 %v1019, %v1035
        %v1042 = vadd.f32 %v1020, %v1030
        %v1043 = vadd.f32 %v1021, %v1036
        %v1044 = vadd.f32 %v1022, %v1034
        %1045 = vrot.lane.b32.xlu0 %v992, 18
        %v1046 = vpop.permute.xlu0 %1045
        %v1048 = vmul.f32 %v804, %v1046
        %v1049 = vmul.f32 %v806, %v1046
        %v1050 = vmul.f32 %v808, %v1046
        %v1051 = vmul.f32 %v810, %v1046
        %1056 = vrot.lane.b32.xlu0 %v1048, 111
        %v1057 = vpop.permute.xlu0 %1056
        %1058 = vrot.lane.b32.xlu0 %v1049, 111
        %v1059 = vpop.permute.xlu0 %1058
        %1060 = vrot.lane.b32.xlu0 %v1050, 111
        %v1061 = vpop.permute.xlu0 %1060
        %1062 = vrot.lane.b32.xlu0 %v1051, 111
        %v1063 = vpop.permute.xlu0 %1062
        %v1064 = vsel %vm960, %v1057, %v1059
        %v1065 = vsel %vm960, %v1061, %v1063
        %v1070 = vadd.f32 %v1041, %v1064
        %v1071 = vadd.f32 %v1042, %v1059
        %v1072 = vadd.f32 %v1043, %v1065
        %v1073 = vadd.f32 %v1044, %v1063
        %v1074 = vadd.f32 %v1070, %v970
        %v1075 = vadd.f32 %v1071, %v970
        %v1076 = vadd.f32 %v1072, %v975
        %v1077 = vadd.f32 %v1073, %v975
        %v1078 = vpack.c.bf16 %v1076, %v1074
        %v1079 = vpack.c.bf16 %v1077, %v1075
        %v1082 = vunpack.c.l.b16 %v1078
        %v1083 = vunpack.c.l.b16 %v1079
        %v1084 = vunpack.c.h.b16 %v1078
        %v1085 = vunpack.c.h.b16 %v1079
        %v1086 = vpack.c.b16 %v1083, %v1082
        %v1087 = vpack.c.b16 %v1085, %v1084
        %1088 = vrot.lane.b32.xlu0 %v1086, 127
        %v1089 = vpop.permute.xlu0 %1088
        %1090 = vrot.lane.b32.xlu0 %v1087, 127
        %v1091 = vpop.permute.xlu0 %1090
        %v1092 = vrot.slane %v1089, 4
        %v1093 = vrot.slane %v1091, 4
        %vm1094 = vcmask 1039360
        %v1095 = vsel %vm1094, %v1089, %v1092
        %v1096 = vsel %vm1094, %v1091, %v1093
        %s1099 = scalar_lea.vmem %s358, 8 [#allocation13]
        %1100 = vst [vmem:[%s1099] sm:$0xf] %v1095
        %1101 = vst [vmem:[%s1099 + $0x4] sm:$0xf] %v1096
        %v1102 = vmul.f32 %v814, %v923
        %v1103 = vmul.f32 %v816, %v923
        %v1104 = vmul.f32 %v818, %v923
        %v1105 = vmul.f32 %v820, %v923
        %1110 = vrot.lane.b32.xlu0 %v824, 127
        %v1111 = vpop.permute.xlu0 %1110
        %1112 = vrot.lane.b32.xlu0 %v826, 127
        %v1113 = vpop.permute.xlu0 %1112
        %1114 = vrot.lane.b32.xlu0 %v828, 127
        %v1115 = vpop.permute.xlu0 %1114
        %1116 = vrot.lane.b32.xlu0 %v830, 127
        %v1117 = vpop.permute.xlu0 %1116
        %v1118 = vsel %vm914, %v1111, %v1113
        %v1119 = vsel %vm914, %v1115, %v1117
        %v1124 = vadd.f32 %v1102, %v1118
        %v1125 = vadd.f32 %v1103, %v1113
        %v1126 = vadd.f32 %v1104, %v1119
        %v1127 = vadd.f32 %v1105, %v1117
        %1128 = vrot.lane.b32.xlu0 %v899, 32
        %v1129 = vpop.permute.xlu0 %1128
        %v1131 = vmul.f32 %v834, %v1129
        %v1132 = vmul.f32 %v836, %v1129
        %v1133 = vmul.f32 %v838, %v1129
        %v1134 = vmul.f32 %v840, %v1129
        %1139 = vrot.lane.b32.xlu0 %v1131, 112
        %v1140 = vpop.permute.xlu0 %1139
        %1141 = vrot.lane.b32.xlu0 %v1132, 112
        %v1142 = vpop.permute.xlu0 %1141
        %1143 = vrot.lane.b32.xlu0 %v1133, 112
        %v1144 = vpop.permute.xlu0 %1143
        %1145 = vrot.lane.b32.xlu0 %v1134, 112
        %v1146 = vpop.permute.xlu0 %1145
        %v1147 = vsel %vm941, %v1140, %v1142
        %v1148 = vsel %vm941, %v1144, %v1146
        %v1153 = vadd.f32 %v1124, %v1147
        %v1154 = vadd.f32 %v1125, %v1142
        %v1155 = vadd.f32 %v1126, %v1148
        %v1156 = vadd.f32 %v1127, %v1146
        %1161 = vrot.lane.b32.xlu0 %v844, 111
        %v1162 = vpop.permute.xlu0 %1161
        %1163 = vrot.lane.b32.xlu0 %v846, 111
        %v1164 = vpop.permute.xlu0 %1163
        %1165 = vrot.lane.b32.xlu0 %v848, 111
        %v1166 = vpop.permute.xlu0 %1165
        %1167 = vrot.lane.b32.xlu0 %v850, 111
        %v1168 = vpop.permute.xlu0 %1167
        %v1169 = vsel %vm960, %v1162, %v1164
        %v1170 = vsel %vm960, %v1166, %v1168
        %v1175 = vadd.f32 %v1153, %v1169
        %v1176 = vadd.f32 %v1154, %v1164
        %v1177 = vadd.f32 %v1155, %v1170
        %v1178 = vadd.f32 %v1156, %v1168
        %v1179 = vadd.f32 %v1175, %v970
        %v1180 = vadd.f32 %v1176, %v970
        %v1181 = vadd.f32 %v1177, %v975
        %v1182 = vadd.f32 %v1178, %v975
        %v1183 = vpack.c.bf16 %v1181, %v1179
        %v1184 = vpack.c.bf16 %v1182, %v1180
        %v1187 = vunpack.c.l.b16 %v1183
        %v1188 = vunpack.c.l.b16 %v1184
        %v1189 = vunpack.c.h.b16 %v1183
        %v1190 = vunpack.c.h.b16 %v1184
        %v1191 = vpack.c.b16 %v1188, %v1187
        %v1192 = vpack.c.b16 %v1190, %v1189
        %1193 = vrot.lane.b32.xlu0 %v1191, 112
        %v1194 = vpop.permute.xlu0 %1193
        %1195 = vrot.lane.b32.xlu0 %v1192, 112
        %v1196 = vpop.permute.xlu0 %1195
        %v1197 = vrot.slane %v1194, 4
        %v1198 = vrot.slane %v1196, 4
        %vm1199 = vcmask 916480
        %v1200 = vsel %vm1199, %v1194, %v1197
        %v1201 = vsel %vm1199, %v1196, %v1198
        %s1204 = scalar_lea.vmem %s358, 16 [#allocation13]
        %1205 = vst [vmem:[%s1204] sm:$0xf] %v1200
        %1206 = vst [vmem:[%s1204 + $0x4] sm:$0xf] %v1201
        %v1207 = vmul.f32 %v864, %v1046
        %v1208 = vmul.f32 %v866, %v1046
        %v1209 = vmul.f32 %v868, %v1046
        %v1210 = vmul.f32 %v870, %v1046
        %1215 = vrot.lane.b32.xlu0 %v1207, 127
        %v1216 = vpop.permute.xlu0 %1215
        %1217 = vrot.lane.b32.xlu0 %v1208, 127
        %v1218 = vpop.permute.xlu0 %1217
        %1219 = vrot.lane.b32.xlu0 %v1209, 127
        %v1220 = vpop.permute.xlu0 %1219
        %1221 = vrot.lane.b32.xlu0 %v1210, 127
        %v1222 = vpop.permute.xlu0 %1221
        %v1223 = vsel %vm914, %v1216, %v1218
        %v1224 = vsel %vm914, %v1220, %v1222
        %v1229 = vadd.f32 %v854, %v1223
        %v1230 = vadd.f32 %v856, %v1218
        %v1231 = vadd.f32 %v858, %v1224
        %v1232 = vadd.f32 %v860, %v1222
        %1237 = vrot.lane.b32.xlu0 %v874, 112
        %v1238 = vpop.permute.xlu0 %1237
        %1239 = vrot.lane.b32.xlu0 %v876, 112
        %v1240 = vpop.permute.xlu0 %1239
        %1241 = vrot.lane.b32.xlu0 %v878, 112
        %v1242 = vpop.permute.xlu0 %1241
        %1243 = vrot.lane.b32.xlu0 %v880, 112
        %v1244 = vpop.permute.xlu0 %1243
        %v1245 = vsel %vm941, %v1238, %v1240
        %v1246 = vsel %vm941, %v1242, %v1244
        %v1251 = vadd.f32 %v1229, %v1245
        %v1252 = vadd.f32 %v1230, %v1240
        %v1253 = vadd.f32 %v1231, %v1246
        %v1254 = vadd.f32 %v1232, %v1244
        %1255 = vrot.lane.b32.xlu0 %v992, 34
        %v1256 = vpop.permute.xlu0 %1255
        %v1258 = vmul.f32 %v884, %v1256
        %v1259 = vmul.f32 %v886, %v1256
        %v1260 = vmul.f32 %v888, %v1256
        %v1261 = vmul.f32 %v890, %v1256
        %1266 = vrot.lane.b32.xlu0 %v1258, 111
        %v1267 = vpop.permute.xlu0 %1266
        %1268 = vrot.lane.b32.xlu0 %v1259, 111
        %v1269 = vpop.permute.xlu0 %1268
        %1270 = vrot.lane.b32.xlu0 %v1260, 111
        %v1271 = vpop.permute.xlu0 %1270
        %1272 = vrot.lane.b32.xlu0 %v1261, 111
        %v1273 = vpop.permute.xlu0 %1272
        %v1274 = vsel %vm960, %v1267, %v1269
        %v1275 = vsel %vm960, %v1271, %v1273
        %v1280 = vadd.f32 %v1251, %v1274
        %v1281 = vadd.f32 %v1252, %v1269
        %v1282 = vadd.f32 %v1253, %v1275
        %v1283 = vadd.f32 %v1254, %v1273
        %v1284 = vadd.f32 %v1280, %v970
        %v1285 = vadd.f32 %v1281, %v970
        %v1286 = vadd.f32 %v1282, %v975
        %v1287 = vadd.f32 %v1283, %v975
        %v1288 = vpack.c.bf16 %v1286, %v1284
        %v1289 = vpack.c.bf16 %v1287, %v1285
        %v1292 = vunpack.c.l.b16 %v1288
        %v1293 = vunpack.c.l.b16 %v1289
        %v1294 = vunpack.c.h.b16 %v1288
        %v1295 = vunpack.c.h.b16 %v1289
        %v1296 = vpack.c.b16 %v1293, %v1292
        %v1297 = vpack.c.b16 %v1295, %v1294
        %1298 = vrot.lane.b32.xlu0 %v1296, 111
        %v1299 = vpop.permute.xlu0 %1298
        %1300 = vrot.lane.b32.xlu0 %v1297, 111
        %v1301 = vpop.permute.xlu0 %1300
        %v1302 = vrot.slane %v1299, 4
        %v1303 = vrot.slane %v1301, 4
        %vm1304 = vcmask 908288
        %v1305 = vsel %vm1304, %v1299, %v1302
        %v1306 = vsel %vm1304, %v1301, %v1303
        %s1309 = scalar_lea.vmem %s358, 24 [#allocation13]
        %1310 = vst [vmem:[%s1309] sm:$0xf] %v1305
        %1311 = vst [vmem:[%s1309 + $0x4] sm:$0xf] %v1306
        %s1312 = sand.u32 %s181, 1
        %s1313 = scalar_lea.sflag [#allocation4], %s1312
        %s1314 = sand.u32 %s181, 1
        %s1315 = smul.addr %s1314, 32
        %s1316 = scalar_lea.vmem [#allocation13], %s1315
        // Predicated region
        $region69: #{fsmd_forward.1} parent=43 // pred_check
          %p1317 = pneg %p191
        $region70: #{fsmd_forward.1} parent=43 // pred_check_branch
          %1319 = sbr.rel (%p1317) target = $region72
        $region71: #{fsmd_forward.1} parent=43 // pred_region
          %s1321 = ssub.s32 512, 512
          %1322 = vsyncadd %s1313, %s1321
          %s1323 = smul.addr %s30, 16
          %s1324 = sadd.s32 %s31, %s1323
          %s1325 = smul.addr %s1324, 64
          %s1326 = scalar_lea.hbm %s6, %s1325
          %s1327 = sshll.u32 %s1316, 4
          %s1328 = int_to_ptr.vmem [resolvable:$true] %s1327
          %1333 = dma.vmem_to_hbm [thread:$0]  %s1328, 512, %s1326, %s1313, 64, 128, 4
        $region72: #{fsmd_forward.1} parent=43 // pred_fallthru
          _
      $region44: #{fsmd_forward.1} parent=5 // pred_fallthru
        _
      %p1334 = scmp.le.s32.totalorder 2, %s21
      // Predicated region
      $region73: #{fsmd_forward.1} parent=5 // pred_check
        %p1335 = pneg %p1334
      $region74: #{fsmd_forward.1} parent=5 // pred_check_branch
        %1337 = sbr.rel (%p1335) target = $region76
      $region75: #{fsmd_forward.1} parent=5 // pred_region
        %s1338 = ssub.s32 %s21, 2
        // Predicated region
        $region77: #{fsmd_forward.1} parent=75 // pred_check
          %p1339 = pneg %p197
        $region78: #{fsmd_forward.1} parent=75 // pred_check_branch
          %1341 = sbr.rel (%p1339) target = $region80
        $region79: #{fsmd_forward.1} parent=75 // pred_region
          %s1342 = sand.u32 %s182, 1
          %s1343 = scalar_lea.sflag [#allocation4], %s1342
          %s1344 = sand.u32 %s182, 1
          %s1345 = smul.addr %s1344, 32
          %s1346 = scalar_lea.vmem [#allocation13], %s1345
          %1347 = dma.done %s1343, 512
        $region80: #{fsmd_forward.1} parent=75 // pred_fallthru
          _
      $region76: #{fsmd_forward.1} parent=5 // pred_fallthru
        _
    $region6: #{fsmd_forward.1} parent=1 // loop_footer
      %s25 = sadd.s32 1, %s21
    $region7: #{fsmd_forward.1} parent=1 // loop_footer_branch
      %20 = sbr.rel target = $region3
    $region8: #{fsmd_forward.1} parent=1 // loop_exit
      _
    %1348 = vsyncpa [#allocation3], 1
    %s1349 = scalar_lea.sflag [#allocation3], 1
    %1350 = vsyncpa %s1349, 1
    %1351 = vsyncpa [#allocation6], 1
    %1352 = vsyncpa [#allocation9], 1
    %1353 = vsyncpa [#allocation12], 1
    %1354 = vsyncpa [#allocation4], 1
    %s1355 = scalar_lea.sflag [#allocation4], 1
    %1356 = vsyncpa %s1355, 1

</llo_original>
